<compile_context>
chip_gen: v7x
topology: tpu7x:2x2x1
jax: 0.10.0
libtpu: 0.0.40
codegen_flags: <defaults>
</compile_context>

<pallas_src>
import functools

import jax
import jax.numpy as jnp
import numpy as np
from jax.experimental import pallas as pl
from jax.experimental.pallas import tpu as pltpu

_TARGET_BLOCK_BYTES = 8 * 1024 * 1024   # per review: ~6-8 MiB input blocks
_VMEM_MARGIN_BYTES = 2 * 1024 * 1024


@functools.lru_cache(maxsize=1)
def _vmem_capacity_bytes():
    """Physical VMEM per core (generation-aware sizing); conservative fallback."""
    try:
        cap = getattr(pltpu.get_tpu_info(), "vmem_capacity_bytes", None)
        if cap:
            return int(cap)
    except Exception:
        pass
    return 64 * 1024 * 1024  # v7x-sized lower bound


def _vmem_limit_bytes():
    phys = _vmem_capacity_bytes()
    # ~70% of physical: ~45 MiB on v7x (64 MiB), ~90 MiB on v5e/v6e (128 MiB).
    return max(32 * 1024 * 1024, min(int(phys * 0.7), phys - 8 * 1024 * 1024))


def _row_block(n_rows, row_in_bytes, row_out_bytes, a_bytes, vmem_limit,
               prefer_two_blocks):
    """Rows per grid step: ~8 MiB of input, inside VMEM, multiple of 8 (or == n_rows)."""
    if n_rows <= 8:
        return n_rows
    budget = max(vmem_limit - a_bytes - _VMEM_MARGIN_BYTES, 1 << 20)
    per_row = 2 * (row_in_bytes + row_out_bytes)          # double-buffered in + out
    tg = min(budget // per_row, _TARGET_BLOCK_BYTES // max(row_in_bytes, 1))
    tg = max(8, (tg // 8) * 8)
    if prefer_two_blocks:
        # keep >= 2 row blocks so both v7x TensorCores get work on the parallel axis
        half = max(8, 8 * ((n_rows + 15) // 16))
        tg = min(tg, half)
    return min(tg, n_rows)


def _build_window_matrix(X, Y, Z, kernel, stride, out_dims, ks):
    """A[k, p] = 1 if input element k of a pooling group lies in output window p.

    Exact 0/1 matrix (representable in bf16); the 1/window averaging scale is applied
    after the matmul as a single VPU multiply.
    """
    kx, ky, kz = kernel
    sx, sy, sz = stride
    Xp, Yp, Zp = out_dims

    def axis_members(n, n_out, k, s):
        i = np.arange(n)[:, None]
        o = np.arange(n_out)[None, :]
        return ((i >= o * s) & (i < o * s + k)).astype(np.float32)

    mx = axis_members(X, Xp, kx, sx)
    my = axis_members(Y, Yp, ky, sy)
    mz = axis_members(Z, Zp, kz, sz)
    a = np.einsum("xa,yb,zc->xyzabc", mx, my, mz).reshape(X * Y * Z, Xp * Yp * Zp)
    a = np.tile(a, (ks, 1))   # every V slice in the sphere window maps identically
    return jnp.asarray(a, dtype=jnp.bfloat16)


def _mixed_pool_kernel(x_ref, a_ref, o_ref, *, inv_window, split_f32):
    # x_ref: (TG, K)  rows = pooling groups, lanes = sphere-window x spatial volume
    # a_ref: (K, P)   constant 0/1 selection matrix, resident in VMEM (single copy)
    # o_ref: (TG, P)  pooled output rows
    x = x_ref[...]
    a = a_ref[...]
    if split_f32:
        # Exact 3-term bf16 decomposition of f32 x: three single-pass MXU matmuls
        # (same pass count as Precision.HIGH / bf16_3x).  Products against the 0/1 A
        # are exact and accumulation is f32, so accuracy stays ~f32.
        h1 = x.astype(jnp.bfloat16)
        r1 = x - h1.astype(jnp.float32)
        h2 = r1.astype(jnp.bfloat16)
        h3 = (r1 - h2.astype(jnp.float32)).astype(jnp.bfloat16)
        acc = jnp.dot(h1, a, preferred_element_type=jnp.float32)
        acc += jnp.dot(h2, a, preferred_element_type=jnp.float32)
        acc += jnp.dot(h3, a, preferred_element_type=jnp.float32)
    else:
        # bf16 inputs: single MXU pass, f32 accumulation, half the HBM read traffic.
        acc = jnp.dot(x, a, preferred_element_type=jnp.float32)
    o_ref[...] = (acc * inv_window).astype(o_ref.dtype)


@functools.partial(jax.jit, static_argnames=("kernel_size_spa", "stride", "kernel_size_sph"))
def mixed_pooling_avg_pool(x, kernel_size_spa=(2, 2, 2), stride=None, kernel_size_sph=4):
    """Forward of MixedPoolingAvgPool (hemisphere=False).

    x: [B, Fin, V, X, Y, Z] -> ([B, Fin, V//ks, Xp, Yp, Zp], [0], [0])
    """
    if stride is None:
        stride = kernel_size_spa
    B, Fin, V, X, Y, Z = x.shape
    kx, ky, kz = kernel_size_spa
    sx, sy, sz = stride
    ks = kernel_size_sph

    Xp = (X - kx) // sx + 1
    Yp = (Y - ky) // sy + 1
    Zp = (Z - kz) // sz + 1
    Vp = V // ks

    if x.dtype not in (jnp.float32, jnp.bfloat16):
        x = x.astype(jnp.float32)
    split_f32 = x.dtype == jnp.float32
    itemsize = x.dtype.itemsize

    S = X * Y * Z
    K = ks * S                # contraction axis (sphere window x spatial volume)
    P = Xp * Yp * Zp          # flattened spatial output (lane axis of the result)
    G = B * Fin * Vp          # total output pooling groups

    if Vp == 0:
        return jnp.zeros((B, Fin, 0, Xp, Yp, Zp), x.dtype), [0], [0]

    a = _build_window_matrix(X, Y, Z, (kx, ky, kz), (sx, sy, sz), (Xp, Yp, Zp), ks)
    a_bytes = K * P * a.dtype.itemsize
    inv_window = 1.0 / float(ks * kx * ky * kz)
    kernel = functools.partial(_mixed_pool_kernel, inv_window=inv_window,
                               split_f32=split_f32)

    vmem_limit = _vmem_limit_bytes()
    passes = 3 if split_f32 else 1
    cost = pl.CostEstimate(
        flops=2 * G * K * P * passes,
        transcendentals=0,
        bytes_accessed=G * K * itemsize + a_bytes + G * P * itemsize,
    )
    a_spec = pl.BlockSpec(memory_space=pltpu.MemorySpace.VMEM)  # one resident copy, no double-buffer

    ragged = V != Vp * ks
    if (not ragged) or (K % 128 != 0):
        # --- Primary path: layout-preserving reshape to [G, K], 1-D grid over rows. ---
        if ragged:
            # TODO(synk): K % 128 != 0 blocks the copy-free ragged path; fall back to a
            # one-off trailing-V slice (extra HBM copy) for this unusual shape.
            x = x[:, :, : Vp * ks]
        x2 = x.reshape(G, K)
        tg = _row_block(G, K * itemsize, P * itemsize, a_bytes, vmem_limit,
                        prefer_two_blocks=True)
        out2 = pl.pallas_call(
            kernel,
            out_shape=jax.ShapeDtypeStruct((G, P), x.dtype),
            grid=(pl.cdiv(G, tg),),
            in_specs=[pl.BlockSpec((tg, K), lambda g: (g, 0)), a_spec],
            out_specs=pl.BlockSpec((tg, P), lambda g: (g, 0)),
            compiler_params=pltpu.CompilerParams(
                dimension_semantics=("parallel",),
                vmem_limit_bytes=vmem_limit,
            ),
            cost_estimate=cost,
        )(x2, a)
        out = out2.reshape(B, Fin, Vp, Xp, Yp, Zp)
    else:
        # --- Ragged-V path: 2-D grid over (B*Fin row-blocks, V-groups) addressing the
        # original [B*Fin, V*S] layout, so the dropped trailing V slices are never read. ---
        BF = B * Fin
        x2 = x.reshape(BF, V * S)
        tbf = _row_block(BF, K * itemsize, P * itemsize, a_bytes, vmem_limit,
                         prefer_two_blocks=False)
        out3 = pl.pallas_call(
            kernel,
            out_shape=jax.ShapeDtypeStruct((Vp, BF, P), x.dtype),
            grid=(pl.cdiv(BF, tbf), Vp),
            in_specs=[pl.BlockSpec((tbf, K), lambda i, j: (i, j)), a_spec],
            out_specs=pl.BlockSpec((None, tbf, P), lambda i, j: (j, i, 0)),
            compiler_params=pltpu.CompilerParams(
                dimension_semantics=("parallel", "parallel"),
                vmem_limit_bytes=vmem_limit,
            ),
            cost_estimate=cost,
        )(x2, a)
        # Cheap: output is ~K/P-times smaller than the input traffic.
        out = jnp.transpose(out3, (1, 0, 2)).reshape(B, Fin, Vp, Xp, Yp, Zp)

    # TODO(synk): when P < 128, pack r = ceil(128/P) V-groups per row (block-diagonal A)
    # for lane-dense output stores; low priority since output is a small traffic fraction.
    indices_spa = [0]
    indices_sph = [0]
    return out, indices_spa, indices_sph


def _reference(x, kernel_size_spa=(2, 2, 2), kernel_size_sph=4):
    """Pure-JAX reference mirroring the PyTorch ops (default stride == kernel)."""
    B, Fin, V, X, Y, Z = x.shape
    kx, ky, kz = kernel_size_spa
    Xp, Yp, Zp = X // kx, Y // ky, Z // kz
    xs = x[..., : Xp * kx, : Yp * ky, : Zp * kz]
    xs = xs.reshape(B, Fin, V, Xp, kx, Yp, ky, Zp, kz).mean(axis=(4, 6, 8))
    Vp = V // kernel_size_sph
    xs = xs[:, :, : Vp * kernel_size_sph]
    xs = xs.reshape(B, Fin, Vp, kernel_size_sph, Xp, Yp, Zp).mean(axis=3)
    return xs  # [B, Fin, Vp, Xp, Yp, Zp]


if __name__ == "__main__":
    key = jax.random.PRNGKey(0)

    # Primary check: default kernel (2,2,2), sphere kernel 4, V % 4 == 0 (1-D path).
    x = jax.random.normal(key, (2, 4, 8, 8, 8, 8), dtype=jnp.float32)
    out, idx_spa, idx_sph = mixed_pooling_avg_pool(x)
    out = jax.block_until_ready(out)
    ref = _reference(x)
    assert out.shape == ref.shape == (2, 4, 2, 4, 4, 4), out.shape
    np.testing.assert_allclose(np.asarray(out), np.asarray(ref), rtol=1e-5, atol=1e-5)
    assert int(np.asarray(idx_spa[0])) == 0 and int(np.asarray(idx_sph[0])) == 0

    # Ragged-V check: non-cubic kernel, V % 4 != 0 (copy-free 2-D grid path).
    key2 = jax.random.split(key)[1]
    x2 = jax.random.normal(key2, (2, 3, 9, 8, 6, 8), dtype=jnp.float32)
    out2, _, _ = mixed_pooling_avg_pool(x2, kernel_size_spa=(2, 3, 2))
    out2 = jax.block_until_ready(out2)
    ref2 = _reference(x2, kernel_size_spa=(2, 3, 2))
    assert out2.shape == ref2.shape == (2, 3, 2, 4, 2, 4), out2.shape
    np.testing.assert_allclose(np.asarray(out2), np.asarray(ref2), rtol=1e-5, atol=1e-5)

    # bf16 pass-through check (single MXU pass, half the HBM read traffic).
    xb = x.astype(jnp.bfloat16)
    outb, _, _ = mixed_pooling_avg_pool(xb)
    outb = jax.block_until_ready(outb)
    refb = _reference(xb.astype(jnp.float32))
    np.testing.assert_allclose(np.asarray(outb.astype(jnp.float32)), np.asarray(refb),
                               rtol=2e-2, atol=2e-2)

    print("KERNEL_OK")
</pallas_src>

<mosaic_0001>
module attributes {stable_mosaic.version = 11 : i64} {
  func.func @_mixed_pool_kernel(%arg0: i32, %arg1: memref<8x2048xf32, #tpu.memory_space<vmem>>, %arg2: memref<2048x64xbf16, #tpu.memory_space<vmem>>, %arg3: memref<8x64xf32, #tpu.memory_space<vmem>>) attributes {dimension_semantics = [#tpu.dimension_semantics<parallel>], iteration_bounds = array<i64: 2>, scalar_prefetch = 0 : i64, scratch_operands = 0 : i64, tpu.core_type = #tpu.core_type<tc>, window_params = [{transform_indices = @transform_0, window_bounds = array<i64: 8, 2048>}, {pipeline_mode = #tpu.pipeline_mode<synchronous>, transform_indices = @transform_1, window_bounds = array<i64: 2048, 64>}, {transform_indices = @transform_2, window_bounds = array<i64: 8, 64>}]} {
    %c0 = arith.constant 0 : index
    %c0_0 = arith.constant 0 : index
    %0 = vector.load %arg1[%c0, %c0_0] : memref<8x2048xf32, #tpu.memory_space<vmem>>, vector<8x2048xf32>
    %c0_1 = arith.constant 0 : index
    %c0_2 = arith.constant 0 : index
    %1 = vector.load %arg2[%c0_1, %c0_2] : memref<2048x64xbf16, #tpu.memory_space<vmem>>, vector<2048x64xbf16>
    %2 = arith.truncf %0 : vector<8x2048xf32> to vector<8x2048xbf16>
    %3 = arith.extf %2 : vector<8x2048xbf16> to vector<8x2048xf32>
    %4 = arith.subf %0, %3 : vector<8x2048xf32>
    %5 = arith.truncf %4 : vector<8x2048xf32> to vector<8x2048xbf16>
    %6 = arith.extf %5 : vector<8x2048xbf16> to vector<8x2048xf32>
    %7 = arith.subf %4, %6 : vector<8x2048xf32>
    %8 = arith.truncf %7 : vector<8x2048xf32> to vector<8x2048xbf16>
    %cst = arith.constant dense<0.000000e+00> : vector<8x64xf32>
    %9 = tpu.matmul %2, %1, %cst {dimension_numbers = #tpu.dot_dimension_numbers<[1], [0], [0], [1], [0, 0, 1, 1], [], []>} : vector<8x2048xbf16>, vector<2048x64xbf16>, vector<8x64xf32> -> vector<8x64xf32>
    %cst_3 = arith.constant dense<0.000000e+00> : vector<8x64xf32>
    %10 = tpu.matmul %5, %1, %cst_3 {dimension_numbers = #tpu.dot_dimension_numbers<[1], [0], [0], [1], [0, 0, 1, 1], [], []>} : vector<8x2048xbf16>, vector<2048x64xbf16>, vector<8x64xf32> -> vector<8x64xf32>
    %11 = arith.addf %9, %10 : vector<8x64xf32>
    %cst_4 = arith.constant dense<0.000000e+00> : vector<8x64xf32>
    %12 = tpu.matmul %8, %1, %cst_4 {dimension_numbers = #tpu.dot_dimension_numbers<[1], [0], [0], [1], [0, 0, 1, 1], [], []>} : vector<8x2048xbf16>, vector<2048x64xbf16>, vector<8x64xf32> -> vector<8x64xf32>
    %13 = arith.addf %11, %12 : vector<8x64xf32>
    %cst_5 = arith.constant 3.125000e-02 : f32
    %14 = vector.broadcast %cst_5 : f32 to vector<8x64xf32>
    %15 = arith.mulf %13, %14 : vector<8x64xf32>
    %c0_6 = arith.constant 0 : index
    %c0_7 = arith.constant 0 : index
    %16 = vector.load %arg3[%c0_6, %c0_7] : memref<8x64xf32, #tpu.memory_space<vmem>>, vector<8x64xf32>
    tpu.vector_store %arg3[%c0_6, %c0_7], %15 {strides = array<i32>} : memref<8x64xf32, #tpu.memory_space<vmem>>, vector<8x64xf32>,
    return
  }
  func.func @transform_0(%arg0: i32) -> (i32, i32) {
    %c0_i32 = arith.constant 0 : i32
    %c0_i32_0 = arith.constant 0 : i32
    return %arg0, %c0_i32 : i32, i32
  }
  func.func @transform_1(%arg0: i32) -> (i32, i32) {
    %c0_i32 = arith.constant 0 : i32
    %c0_i32_0 = arith.constant 0 : i32
    %c0_i32_1 = arith.constant 0 : i32
    return %c0_i32, %c0_i32_0 : i32, i32
  }
  func.func @transform_2(%arg0: i32) -> (i32, i32) {
    %c0_i32 = arith.constant 0 : i32
    %c0_i32_0 = arith.constant 0 : i32
    return %arg0, %c0_i32 : i32, i32
  }
}

</mosaic_0001>

<llo_original>
// kernel: mixed_pooling_avg_pool.1
$region0: #{mixed_pooling_avg_pool.1}
  #allocation0 [shape = 'u32[]', space=smem, size = 0x4, offset = 0x4, fixed_abs, tag = 'smem constant byte address 0x4 - core index']
  #allocation1 [shape = 'u32[144,128]{1,0:T(1,128)}', space=vmem, size = 0x12000, scoped, tag = 'internal scratch']
  %s0 = inlined_call_operand.vmem [shape: f32[16,2048], index: 0, kind: input, shape index: {}]
  %s1 = inlined_call_operand.vmem [shape: bf16[2048,64], index: 1, kind: input, shape index: {}]
  %s2 = inlined_call_operand.vmem [shape: f32[16,64], index: 2, kind: output, shape index: {}]
  %s3 = sld [smem:[#allocation0]]
  $region41: #{mixed_pooling_avg_pool.1} parent=0
    _
  %s5 = ssub.s32 1, %s3
  %s6 = scalar_select 0, %s5, %s3
  loop: start=0, step=1, limit=4
  $region2: #{mixed_pooling_avg_pool.1} parent=0 // loop_pre_header
    _
  $region3: #{mixed_pooling_avg_pool.1} parent=0 // loop_header
    %s8 = sphi 0, %s12
    %p9 = scmp.ge.s32.totalorder %s8, 4
    %s18 = sphi 0, %s20
    %s21 = sphi 0, %s18
    %s22 = sphi 0, %s21
    %s38 = sphi 0, %s22
    %s42 = sphi 0, %s42
    %s44 = sphi 0, %s42
    %s45 = sphi 0, %s44
    %s59 = sphi 0, %s45
    %s65 = sphi 0, %s67
    %s68 = sphi 0, %s65
    %s69 = sphi 0, %s68
    %s85 = sphi 0, %s69
  $region4: #{mixed_pooling_avg_pool.1} parent=0 // loop_header_branch
    %11 = sbr.rel (%p9) target = $region8
  $region5: #{mixed_pooling_avg_pool.1} parent=0 // loop_body
    %s13 = ssub.s32 %s8, 1
    %s14 = ssub.s32 %s8, 2
    %s15 = sadd.s32 %s8, 1
    %s16 = ssub.s32 %s8, %s15
    %p17 = scmp.eq.s32.totalorder %s16, 0
    %s19 = sadd.s32 %s18, 1
    %s20 = scalar_select %p17, %s18, %s19
    %p23 = pneg %p17
    %p24 = scmp.eq.s32.totalorder %s8, 1
    %p25 = por %p23, %p24
    %p26 = scmp.ne.s32.totalorder %s18, %s21
    %p27 = scmp.eq.s32.totalorder %s8, 0
    %p28 = por %p26, %p27
    %p29 = scmp.ne.s32.totalorder %s18, %s21
    %p30 = scmp.eq.s32.totalorder %s13, 1
    %p31 = por %p29, %p30
    %p32 = scmp.ne.s32.totalorder %s21, %s22
    %p33 = scmp.eq.s32.totalorder %s13, 0
    %p34 = por %p32, %p33
    %p35 = scmp.ne.s32.totalorder %s21, %s22
    %p36 = scmp.eq.s32.totalorder %s14, 1
    %p37 = por %p35, %p36
    %p39 = scmp.ne.s32.totalorder %s22, %s38
    %p40 = scmp.eq.s32.totalorder %s14, 0
    %p41 = por %p39, %p40
    %s43 = sadd.s32 %s42, 1
    %p46 = scmp.eq.s32.totalorder %s8, 1
    %p47 = scmp.ne.s32.totalorder %s42, %s44
    %p48 = scmp.eq.s32.totalorder %s8, 0
    %p49 = por %p47, %p48
    %p50 = scmp.ne.s32.totalorder %s42, %s44
    %p51 = scmp.eq.s32.totalorder %s13, 1
    %p52 = por %p50, %p51
    %p53 = scmp.ne.s32.totalorder %s44, %s45
    %p54 = scmp.eq.s32.totalorder %s13, 0
    %p55 = por %p53, %p54
    %p56 = scmp.ne.s32.totalorder %s44, %s45
    %p57 = scmp.eq.s32.totalorder %s14, 1
    %p58 = por %p56, %p57
    %p60 = scmp.ne.s32.totalorder %s45, %s59
    %p61 = scmp.eq.s32.totalorder %s14, 0
    %p62 = por %p60, %p61
    %s63 = ssub.s32 %s8, %s15
    %p64 = scmp.eq.s32.totalorder %s63, 0
    %s66 = sadd.s32 %s65, 1
    %s67 = scalar_select %p64, %s65, %s66
    %p70 = pneg %p64
    %p71 = scmp.eq.s32.totalorder %s8, 1
    %p72 = por %p70, %p71
    %p73 = scmp.ne.s32.totalorder %s65, %s68
    %p74 = scmp.eq.s32.totalorder %s8, 0
    %p75 = por %p73, %p74
    %p76 = scmp.ne.s32.totalorder %s65, %s68
    %p77 = scmp.eq.s32.totalorder %s13, 1
    %p78 = por %p76, %p77
    %p79 = scmp.ne.s32.totalorder %s68, %s69
    %p80 = scmp.eq.s32.totalorder %s13, 0
    %p81 = por %p79, %p80
    %p82 = scmp.ne.s32.totalorder %s68, %s69
    %p83 = scmp.eq.s32.totalorder %s14, 1
    %p84 = por %p82, %p83
    %p86 = scmp.ne.s32.totalorder %s69, %s85
    %p87 = scmp.eq.s32.totalorder %s14, 0
    %p88 = por %p86, %p87
    %p89 = scmp.le.s32.totalorder 1, %s8
    %p90 = scmp.lt.s32.totalorder %s8, 3
    %p91 = pnand %p89, %p90
    %p92 = pneg %p91
    // Predicated region
    $region9: #{mixed_pooling_avg_pool.1} parent=5 // pred_check
      _
    $region10: #{mixed_pooling_avg_pool.1} parent=5 // pred_check_branch
      %94 = sbr.rel (%p91) target = $region12
    $region11: #{mixed_pooling_avg_pool.1} parent=5 // pred_region
      %s95 = ssub.s32 %s8, 1
      // Predicated region
      $region13: #{mixed_pooling_avg_pool.1} parent=11 // pred_check
        %p96 = pneg %p55
      $region14: #{mixed_pooling_avg_pool.1} parent=11 // pred_check_branch
        %98 = sbr.rel (%p96) target = $region16
      $region15: #{mixed_pooling_avg_pool.1} parent=11 // pred_region
        _
      $region16: #{mixed_pooling_avg_pool.1} parent=11 // pred_fallthru
        _
    $region12: #{mixed_pooling_avg_pool.1} parent=5 // pred_fallthru
      _
    %p99 = scmp.lt.s32.totalorder %s8, 2
    // Predicated region
    $region17: #{mixed_pooling_avg_pool.1} parent=5 // pred_check
      %p100 = pneg %p99
    $region18: #{mixed_pooling_avg_pool.1} parent=5 // pred_check_branch
      %102 = sbr.rel (%p100) target = $region20
    $region19: #{mixed_pooling_avg_pool.1} parent=5 // pred_region
      // Predicated region
      $region21: #{mixed_pooling_avg_pool.1} parent=19 // pred_check
        %p103 = pneg %p28
      $region22: #{mixed_pooling_avg_pool.1} parent=19 // pred_check_branch
        %105 = sbr.rel (%p103) target = $region24
      $region23: #{mixed_pooling_avg_pool.1} parent=19 // pred_region
        %p106 = scmp.lt.s32.totalorder %s8, 1
        %s107 = scalar_select %p106, %s8, 1
        %s108 = smul.addr %s107, 16
        %s109 = smul.addr %s108, 8
        %s110 = scalar_lea.vmem %s0, %s109
      $region24: #{mixed_pooling_avg_pool.1} parent=19 // pred_fallthru
        _
    $region20: #{mixed_pooling_avg_pool.1} parent=5 // pred_fallthru
      _
    %p111 = scmp.le.s32.totalorder 1, %s8
    %p112 = scmp.lt.s32.totalorder %s8, 3
    %p113 = pnand %p111, %p112
    %p114 = pneg %p113
    // Predicated region
    $region25: #{mixed_pooling_avg_pool.1} parent=5 // pred_check
      _
    $region26: #{mixed_pooling_avg_pool.1} parent=5 // pred_check_branch
      %116 = sbr.rel (%p113) target = $region28
    $region27: #{mixed_pooling_avg_pool.1} parent=5 // pred_region
      %s117 = ssub.s32 %s8, 1
      %p118 = scmp.lt.s32.totalorder %s13, 1
      %s119 = scalar_select %p118, %s13, 1
      %s120 = smul.addr %s119, 16
      %s121 = smul.addr %s120, 8
      %s122 = scalar_lea.vmem %s0, %s121
      %p123 = pneg %p34
      %p124 = pneg %p31
      %p125 = pneg %p55
      %p126 = pneg %p52
      %p127 = pneg %p81
      %p128 = pneg %p78
      %p129 = scmp.lt.s32.totalorder %s13, 1
      %s130 = scalar_select %p129, %s13, 1
      %s131 = smul.addr %s130, 8
      %s132 = scalar_lea.vmem %s2, %s131
      %p133 = scmp.lt.s32.totalorder %s13, 1
      %s134 = scalar_select %p133, %s13, 1
      %s135 = smul.addr %s134, 16
      %s136 = smul.addr %s135, 8
      %s137 = scalar_lea.vmem %s0, %s136
      %p138 = scmp.lt.s32.totalorder %s13, 1
      %s139 = scalar_select %p138, %s13, 1
      %s140 = smul.addr %s139, 8
      %s141 = scalar_lea.vmem %s2, %s140
      %v143 = vld [vmem:[%s137] sm:$0xff]
      %v144 = vld [vmem:[%s137 + $0x8] sm:$0xff]
      %v145 = vld [vmem:[%s137 + $0x10] sm:$0xff]
      %v146 = vld [vmem:[%s137 + $0x18] sm:$0xff]
      %v147 = vld [vmem:[%s137 + $0x20] sm:$0xff]
      %v148 = vld [vmem:[%s137 + $0x28] sm:$0xff]
      %v149 = vld [vmem:[%s137 + $0x30] sm:$0xff]
      %v150 = vld [vmem:[%s137 + $0x38] sm:$0xff]
      %v151 = vld [vmem:[%s137 + $0x40] sm:$0xff]
      %v152 = vld [vmem:[%s137 + $0x48] sm:$0xff]
      %v153 = vld [vmem:[%s137 + $0x50] sm:$0xff]
      %v154 = vld [vmem:[%s137 + $0x58] sm:$0xff]
      %v155 = vld [vmem:[%s137 + $0x60] sm:$0xff]
      %v156 = vld [vmem:[%s137 + $0x68] sm:$0xff]
      %v157 = vld [vmem:[%s137 + $0x70] sm:$0xff]
      %v158 = vld [vmem:[%s137 + $0x78] sm:$0xff]
      %v159 = vld [vmem:[%s1] sm:$0xf]
      %v160 = vld [vmem:[%s1 + $0x4] sm:$0xf]
      %v161 = vld [vmem:[%s1 + $0x8] sm:$0xf]
      %v162 = vld [vmem:[%s1 + $0xc] sm:$0xf]
      %v163 = vld [vmem:[%s1 + $0x10] sm:$0xf]
      %v164 = vld [vmem:[%s1 + $0x14] sm:$0xf]
      %v165 = vld [vmem:[%s1 + $0x18] sm:$0xf]
      %v166 = vld [vmem:[%s1 + $0x1c] sm:$0xf]
      %v167 = vld [vmem:[%s1 + $0x20] sm:$0xf]
      %v168 = vld [vmem:[%s1 + $0x24] sm:$0xf]
      %v169 = vld [vmem:[%s1 + $0x28] sm:$0xf]
      %v170 = vld [vmem:[%s1 + $0x2c] sm:$0xf]
      %v171 = vld [vmem:[%s1 + $0x30] sm:$0xf]
      %v172 = vld [vmem:[%s1 + $0x34] sm:$0xf]
      %v173 = vld [vmem:[%s1 + $0x38] sm:$0xf]
      %v174 = vld [vmem:[%s1 + $0x3c] sm:$0xf]
      %v175 = vld [vmem:[%s1 + $0x40] sm:$0xf]
      %v176 = vld [vmem:[%s1 + $0x44] sm:$0xf]
      %v177 = vld [vmem:[%s1 + $0x48] sm:$0xf]
      %v178 = vld [vmem:[%s1 + $0x4c] sm:$0xf]
      %v179 = vld [vmem:[%s1 + $0x50] sm:$0xf]
      %v180 = vld [vmem:[%s1 + $0x54] sm:$0xf]
      %v181 = vld [vmem:[%s1 + $0x58] sm:$0xf]
      %v182 = vld [vmem:[%s1 + $0x5c] sm:$0xf]
      %v183 = vld [vmem:[%s1 + $0x60] sm:$0xf]
      %v184 = vld [vmem:[%s1 + $0x64] sm:$0xf]
      %v185 = vld [vmem:[%s1 + $0x68] sm:$0xf]
      %v186 = vld [vmem:[%s1 + $0x6c] sm:$0xf]
      %v187 = vld [vmem:[%s1 + $0x70] sm:$0xf]
      %v188 = vld [vmem:[%s1 + $0x74] sm:$0xf]
      %v189 = vld [vmem:[%s1 + $0x78] sm:$0xf]
      %v190 = vld [vmem:[%s1 + $0x7c] sm:$0xf]
      %v191 = vld [vmem:[%s1 + $0x80] sm:$0xf]
      %v192 = vld [vmem:[%s1 + $0x84] sm:$0xf]
      %v193 = vld [vmem:[%s1 + $0x88] sm:$0xf]
      %v194 = vld [vmem:[%s1 + $0x8c] sm:$0xf]
      %v195 = vld [vmem:[%s1 + $0x90] sm:$0xf]
      %v196 = vld [vmem:[%s1 + $0x94] sm:$0xf]
      %v197 = vld [vmem:[%s1 + $0x98] sm:$0xf]
      %v198 = vld [vmem:[%s1 + $0x9c] sm:$0xf]
      %v199 = vld [vmem:[%s1 + $0xa0] sm:$0xf]
      %v200 = vld [vmem:[%s1 + $0xa4] sm:$0xf]
      %v201 = vld [vmem:[%s1 + $0xa8] sm:$0xf]
      %v202 = vld [vmem:[%s1 + $0xac] sm:$0xf]
      %v203 = vld [vmem:[%s1 + $0xb0] sm:$0xf]
      %v204 = vld [vmem:[%s1 + $0xb4] sm:$0xf]
      %v205 = vld [vmem:[%s1 + $0xb8] sm:$0xf]
      %v206 = vld [vmem:[%s1 + $0xbc] sm:$0xf]
      %v207 = vld [vmem:[%s1 + $0xc0] sm:$0xf]
      %v208 = vld [vmem:[%s1 + $0xc4] sm:$0xf]
      %v209 = vld [vmem:[%s1 + $0xc8] sm:$0xf]
      %v210 = vld [vmem:[%s1 + $0xcc] sm:$0xf]
      %v211 = vld [vmem:[%s1 + $0xd0] sm:$0xf]
      %v212 = vld [vmem:[%s1 + $0xd4] sm:$0xf]
      %v213 = vld [vmem:[%s1 + $0xd8] sm:$0xf]
      %v214 = vld [vmem:[%s1 + $0xdc] sm:$0xf]
      %v215 = vld [vmem:[%s1 + $0xe0] sm:$0xf]
      %v216 = vld [vmem:[%s1 + $0xe4] sm:$0xf]
      %v217 = vld [vmem:[%s1 + $0xe8] sm:$0xf]
      %v218 = vld [vmem:[%s1 + $0xec] sm:$0xf]
      %v219 = vld [vmem:[%s1 + $0xf0] sm:$0xf]
      %v220 = vld [vmem:[%s1 + $0xf4] sm:$0xf]
      %v221 = vld [vmem:[%s1 + $0xf8] sm:$0xf]
      %v222 = vld [vmem:[%s1 + $0xfc] sm:$0xf]
      %v223 = vld [vmem:[%s1 + $0x100] sm:$0xf]
      %v224 = vld [vmem:[%s1 + $0x104] sm:$0xf]
      %v225 = vld [vmem:[%s1 + $0x108] sm:$0xf]
      %v226 = vld [vmem:[%s1 + $0x10c] sm:$0xf]
      %v227 = vld [vmem:[%s1 + $0x110] sm:$0xf]
      %v228 = vld [vmem:[%s1 + $0x114] sm:$0xf]
      %v229 = vld [vmem:[%s1 + $0x118] sm:$0xf]
      %v230 = vld [vmem:[%s1 + $0x11c] sm:$0xf]
      %v231 = vld [vmem:[%s1 + $0x120] sm:$0xf]
      %v232 = vld [vmem:[%s1 + $0x124] sm:$0xf]
      %v233 = vld [vmem:[%s1 + $0x128] sm:$0xf]
      %v234 = vld [vmem:[%s1 + $0x12c] sm:$0xf]
      %v235 = vld [vmem:[%s1 + $0x130] sm:$0xf]
      %v236 = vld [vmem:[%s1 + $0x134] sm:$0xf]
      %v237 = vld [vmem:[%s1 + $0x138] sm:$0xf]
      %v238 = vld [vmem:[%s1 + $0x13c] sm:$0xf]
      %v239 = vld [vmem:[%s1 + $0x140] sm:$0xf]
      %v240 = vld [vmem:[%s1 + $0x144] sm:$0xf]
      %v241 = vld [vmem:[%s1 + $0x148] sm:$0xf]
      %v242 = vld [vmem:[%s1 + $0x14c] sm:$0xf]
      %v243 = vld [vmem:[%s1 + $0x150] sm:$0xf]
      %v244 = vld [vmem:[%s1 + $0x154] sm:$0xf]
      %v245 = vld [vmem:[%s1 + $0x158] sm:$0xf]
      %v246 = vld [vmem:[%s1 + $0x15c] sm:$0xf]
      %v247 = vld [vmem:[%s1 + $0x160] sm:$0xf]
      %v248 = vld [vmem:[%s1 + $0x164] sm:$0xf]
      %v249 = vld [vmem:[%s1 + $0x168] sm:$0xf]
      %v250 = vld [vmem:[%s1 + $0x16c] sm:$0xf]
      %v251 = vld [vmem:[%s1 + $0x170] sm:$0xf]
      %v252 = vld [vmem:[%s1 + $0x174] sm:$0xf]
      %v253 = vld [vmem:[%s1 + $0x178] sm:$0xf]
      %v254 = vld [vmem:[%s1 + $0x17c] sm:$0xf]
      %v255 = vld [vmem:[%s1 + $0x180] sm:$0xf]
      %v256 = vld [vmem:[%s1 + $0x184] sm:$0xf]
      %v257 = vld [vmem:[%s1 + $0x188] sm:$0xf]
      %v258 = vld [vmem:[%s1 + $0x18c] sm:$0xf]
      %v259 = vld [vmem:[%s1 + $0x190] sm:$0xf]
      %v260 = vld [vmem:[%s1 + $0x194] sm:$0xf]
      %v261 = vld [vmem:[%s1 + $0x198] sm:$0xf]
      %v262 = vld [vmem:[%s1 + $0x19c] sm:$0xf]
      %v263 = vld [vmem:[%s1 + $0x1a0] sm:$0xf]
      %v264 = vld [vmem:[%s1 + $0x1a4] sm:$0xf]
      %v265 = vld [vmem:[%s1 + $0x1a8] sm:$0xf]
      %v266 = vld [vmem:[%s1 + $0x1ac] sm:$0xf]
      %v267 = vld [vmem:[%s1 + $0x1b0] sm:$0xf]
      %v268 = vld [vmem:[%s1 + $0x1b4] sm:$0xf]
      %v269 = vld [vmem:[%s1 + $0x1b8] sm:$0xf]
      %v270 = vld [vmem:[%s1 + $0x1bc] sm:$0xf]
      %v271 = vld [vmem:[%s1 + $0x1c0] sm:$0xf]
      %v272 = vld [vmem:[%s1 + $0x1c4] sm:$0xf]
      %v273 = vld [vmem:[%s1 + $0x1c8] sm:$0xf]
      %v274 = vld [vmem:[%s1 + $0x1cc] sm:$0xf]
      %v275 = vld [vmem:[%s1 + $0x1d0] sm:$0xf]
      %v276 = vld [vmem:[%s1 + $0x1d4] sm:$0xf]
      %v277 = vld [vmem:[%s1 + $0x1d8] sm:$0xf]
      %v278 = vld [vmem:[%s1 + $0x1dc] sm:$0xf]
      %v279 = vld [vmem:[%s1 + $0x1e0] sm:$0xf]
      %v280 = vld [vmem:[%s1 + $0x1e4] sm:$0xf]
      %v281 = vld [vmem:[%s1 + $0x1e8] sm:$0xf]
      %v282 = vld [vmem:[%s1 + $0x1ec] sm:$0xf]
      %v283 = vld [vmem:[%s1 + $0x1f0] sm:$0xf]
      %v284 = vld [vmem:[%s1 + $0x1f4] sm:$0xf]
      %v285 = vld [vmem:[%s1 + $0x1f8] sm:$0xf]
      %v286 = vld [vmem:[%s1 + $0x1fc] sm:$0xf]
      %v287 = vld [vmem:[%s1 + $0x200] sm:$0xf]
      %v288 = vld [vmem:[%s1 + $0x204] sm:$0xf]
      %v289 = vld [vmem:[%s1 + $0x208] sm:$0xf]
      %v290 = vld [vmem:[%s1 + $0x20c] sm:$0xf]
      %v291 = vld [vmem:[%s1 + $0x210] sm:$0xf]
      %v292 = vld [vmem:[%s1 + $0x214] sm:$0xf]
      %v293 = vld [vmem:[%s1 + $0x218] sm:$0xf]
      %v294 = vld [vmem:[%s1 + $0x21c] sm:$0xf]
      %v295 = vld [vmem:[%s1 + $0x220] sm:$0xf]
      %v296 = vld [vmem:[%s1 + $0x224] sm:$0xf]
      %v297 = vld [vmem:[%s1 + $0x228] sm:$0xf]
      %v298 = vld [vmem:[%s1 + $0x22c] sm:$0xf]
      %v299 = vld [vmem:[%s1 + $0x230] sm:$0xf]
      %v300 = vld [vmem:[%s1 + $0x234] sm:$0xf]
      %v301 = vld [vmem:[%s1 + $0x238] sm:$0xf]
      %v302 = vld [vmem:[%s1 + $0x23c] sm:$0xf]
      %v303 = vld [vmem:[%s1 + $0x240] sm:$0xf]
      %v304 = vld [vmem:[%s1 + $0x244] sm:$0xf]
      %v305 = vld [vmem:[%s1 + $0x248] sm:$0xf]
      %v306 = vld [vmem:[%s1 + $0x24c] sm:$0xf]
      %v307 = vld [vmem:[%s1 + $0x250] sm:$0xf]
      %v308 = vld [vmem:[%s1 + $0x254] sm:$0xf]
      %v309 = vld [vmem:[%s1 + $0x258] sm:$0xf]
      %v310 = vld [vmem:[%s1 + $0x25c] sm:$0xf]
      %v311 = vld [vmem:[%s1 + $0x260] sm:$0xf]
      %v312 = vld [vmem:[%s1 + $0x264] sm:$0xf]
      %v313 = vld [vmem:[%s1 + $0x268] sm:$0xf]
      %v314 = vld [vmem:[%s1 + $0x26c] sm:$0xf]
      %v315 = vld [vmem:[%s1 + $0x270] sm:$0xf]
      %v316 = vld [vmem:[%s1 + $0x274] sm:$0xf]
      %v317 = vld [vmem:[%s1 + $0x278] sm:$0xf]
      %v318 = vld [vmem:[%s1 + $0x27c] sm:$0xf]
      %v319 = vld [vmem:[%s1 + $0x280] sm:$0xf]
      %v320 = vld [vmem:[%s1 + $0x284] sm:$0xf]
      %v321 = vld [vmem:[%s1 + $0x288] sm:$0xf]
      %v322 = vld [vmem:[%s1 + $0x28c] sm:$0xf]
      %v323 = vld [vmem:[%s1 + $0x290] sm:$0xf]
      %v324 = vld [vmem:[%s1 + $0x294] sm:$0xf]
      %v325 = vld [vmem:[%s1 + $0x298] sm:$0xf]
      %v326 = vld [vmem:[%s1 + $0x29c] sm:$0xf]
      %v327 = vld [vmem:[%s1 + $0x2a0] sm:$0xf]
      %v328 = vld [vmem:[%s1 + $0x2a4] sm:$0xf]
      %v329 = vld [vmem:[%s1 + $0x2a8] sm:$0xf]
      %v330 = vld [vmem:[%s1 + $0x2ac] sm:$0xf]
      %v331 = vld [vmem:[%s1 + $0x2b0] sm:$0xf]
      %v332 = vld [vmem:[%s1 + $0x2b4] sm:$0xf]
      %v333 = vld [vmem:[%s1 + $0x2b8] sm:$0xf]
      %v334 = vld [vmem:[%s1 + $0x2bc] sm:$0xf]
      %v335 = vld [vmem:[%s1 + $0x2c0] sm:$0xf]
      %v336 = vld [vmem:[%s1 + $0x2c4] sm:$0xf]
      %v337 = vld [vmem:[%s1 + $0x2c8] sm:$0xf]
      %v338 = vld [vmem:[%s1 + $0x2cc] sm:$0xf]
      %v339 = vld [vmem:[%s1 + $0x2d0] sm:$0xf]
      %v340 = vld [vmem:[%s1 + $0x2d4] sm:$0xf]
      %v341 = vld [vmem:[%s1 + $0x2d8] sm:$0xf]
      %v342 = vld [vmem:[%s1 + $0x2dc] sm:$0xf]
      %v343 = vld [vmem:[%s1 + $0x2e0] sm:$0xf]
      %v344 = vld [vmem:[%s1 + $0x2e4] sm:$0xf]
      %v345 = vld [vmem:[%s1 + $0x2e8] sm:$0xf]
      %v346 = vld [vmem:[%s1 + $0x2ec] sm:$0xf]
      %v347 = vld [vmem:[%s1 + $0x2f0] sm:$0xf]
      %v348 = vld [vmem:[%s1 + $0x2f4] sm:$0xf]
      %v349 = vld [vmem:[%s1 + $0x2f8] sm:$0xf]
      %v350 = vld [vmem:[%s1 + $0x2fc] sm:$0xf]
      %v351 = vld [vmem:[%s1 + $0x300] sm:$0xf]
      %v352 = vld [vmem:[%s1 + $0x304] sm:$0xf]
      %v353 = vld [vmem:[%s1 + $0x308] sm:$0xf]
      %v354 = vld [vmem:[%s1 + $0x30c] sm:$0xf]
      %v355 = vld [vmem:[%s1 + $0x310] sm:$0xf]
      %v356 = vld [vmem:[%s1 + $0x314] sm:$0xf]
      %v357 = vld [vmem:[%s1 + $0x318] sm:$0xf]
      %v358 = vld [vmem:[%s1 + $0x31c] sm:$0xf]
      %v359 = vld [vmem:[%s1 + $0x320] sm:$0xf]
      %v360 = vld [vmem:[%s1 + $0x324] sm:$0xf]
      %v361 = vld [vmem:[%s1 + $0x328] sm:$0xf]
      %v362 = vld [vmem:[%s1 + $0x32c] sm:$0xf]
      %v363 = vld [vmem:[%s1 + $0x330] sm:$0xf]
      %v364 = vld [vmem:[%s1 + $0x334] sm:$0xf]
      %v365 = vld [vmem:[%s1 + $0x338] sm:$0xf]
      %v366 = vld [vmem:[%s1 + $0x33c] sm:$0xf]
      %v367 = vld [vmem:[%s1 + $0x340] sm:$0xf]
      %v368 = vld [vmem:[%s1 + $0x344] sm:$0xf]
      %v369 = vld [vmem:[%s1 + $0x348] sm:$0xf]
      %v370 = vld [vmem:[%s1 + $0x34c] sm:$0xf]
      %v371 = vld [vmem:[%s1 + $0x350] sm:$0xf]
      %v372 = vld [vmem:[%s1 + $0x354] sm:$0xf]
      %v373 = vld [vmem:[%s1 + $0x358] sm:$0xf]
      %v374 = vld [vmem:[%s1 + $0x35c] sm:$0xf]
      %v375 = vld [vmem:[%s1 + $0x360] sm:$0xf]
      %v376 = vld [vmem:[%s1 + $0x364] sm:$0xf]
      %v377 = vld [vmem:[%s1 + $0x368] sm:$0xf]
      %v378 = vld [vmem:[%s1 + $0x36c] sm:$0xf]
      %v379 = vld [vmem:[%s1 + $0x370] sm:$0xf]
      %v380 = vld [vmem:[%s1 + $0x374] sm:$0xf]
      %v381 = vld [vmem:[%s1 + $0x378] sm:$0xf]
      %v382 = vld [vmem:[%s1 + $0x37c] sm:$0xf]
      %v383 = vld [vmem:[%s1 + $0x380] sm:$0xf]
      %v384 = vld [vmem:[%s1 + $0x384] sm:$0xf]
      %v385 = vld [vmem:[%s1 + $0x388] sm:$0xf]
      %v386 = vld [vmem:[%s1 + $0x38c] sm:$0xf]
      %v387 = vld [vmem:[%s1 + $0x390] sm:$0xf]
      %v388 = vld [vmem:[%s1 + $0x394] sm:$0xf]
      %v389 = vld [vmem:[%s1 + $0x398] sm:$0xf]
      %v390 = vld [vmem:[%s1 + $0x39c] sm:$0xf]
      %v391 = vld [vmem:[%s1 + $0x3a0] sm:$0xf]
      %v392 = vld [vmem:[%s1 + $0x3a4] sm:$0xf]
      %v393 = vld [vmem:[%s1 + $0x3a8] sm:$0xf]
      %v394 = vld [vmem:[%s1 + $0x3ac] sm:$0xf]
      %v395 = vld [vmem:[%s1 + $0x3b0] sm:$0xf]
      %v396 = vld [vmem:[%s1 + $0x3b4] sm:$0xf]
      %v397 = vld [vmem:[%s1 + $0x3b8] sm:$0xf]
      %v398 = vld [vmem:[%s1 + $0x3bc] sm:$0xf]
      %v399 = vld [vmem:[%s1 + $0x3c0] sm:$0xf]
      %v400 = vld [vmem:[%s1 + $0x3c4] sm:$0xf]
      %v401 = vld [vmem:[%s1 + $0x3c8] sm:$0xf]
      %v402 = vld [vmem:[%s1 + $0x3cc] sm:$0xf]
      %v403 = vld [vmem:[%s1 + $0x3d0] sm:$0xf]
      %v404 = vld [vmem:[%s1 + $0x3d4] sm:$0xf]
      %v405 = vld [vmem:[%s1 + $0x3d8] sm:$0xf]
      %v406 = vld [vmem:[%s1 + $0x3dc] sm:$0xf]
      %v407 = vld [vmem:[%s1 + $0x3e0] sm:$0xf]
      %v408 = vld [vmem:[%s1 + $0x3e4] sm:$0xf]
      %v409 = vld [vmem:[%s1 + $0x3e8] sm:$0xf]
      %v410 = vld [vmem:[%s1 + $0x3ec] sm:$0xf]
      %v411 = vld [vmem:[%s1 + $0x3f0] sm:$0xf]
      %v412 = vld [vmem:[%s1 + $0x3f4] sm:$0xf]
      %v413 = vld [vmem:[%s1 + $0x3f8] sm:$0xf]
      %v414 = vld [vmem:[%s1 + $0x3fc] sm:$0xf]
      %v415 = vpack.c.bf16 %v143, %v143
      %v416 = vpack.c.bf16 %v144, %v144
      %v417 = vpack.c.bf16 %v145, %v145
      %v418 = vpack.c.bf16 %v146, %v146
      %v419 = vpack.c.bf16 %v147, %v147
      %v420 = vpack.c.bf16 %v148, %v148
      %v421 = vpack.c.bf16 %v149, %v149
      %v422 = vpack.c.bf16 %v150, %v150
      %v423 = vpack.c.bf16 %v151, %v151
      %v424 = vpack.c.bf16 %v152, %v152
      %v425 = vpack.c.bf16 %v153, %v153
      %v426 = vpack.c.bf16 %v154, %v154
      %v427 = vpack.c.bf16 %v155, %v155
      %v428 = vpack.c.bf16 %v156, %v156
      %v429 = vpack.c.bf16 %v157, %v157
      %v430 = vpack.c.bf16 %v158, %v158
      %v431 = vunpack.c.l.bf16 %v415
      %v432 = vunpack.c.l.bf16 %v416
      %v433 = vunpack.c.l.bf16 %v417
      %v434 = vunpack.c.l.bf16 %v418
      %v435 = vunpack.c.l.bf16 %v419
      %v436 = vunpack.c.l.bf16 %v420
      %v437 = vunpack.c.l.bf16 %v421
      %v438 = vunpack.c.l.bf16 %v422
      %v439 = vunpack.c.l.bf16 %v423
      %v440 = vunpack.c.l.bf16 %v424
      %v441 = vunpack.c.l.bf16 %v425
      %v442 = vunpack.c.l.bf16 %v426
      %v443 = vunpack.c.l.bf16 %v427
      %v444 = vunpack.c.l.bf16 %v428
      %v445 = vunpack.c.l.bf16 %v429
      %v446 = vunpack.c.l.bf16 %v430
      %v447 = vsub.f32 %v143, %v431
      %v448 = vsub.f32 %v144, %v432
      %v449 = vsub.f32 %v145, %v433
      %v450 = vsub.f32 %v146, %v434
      %v451 = vsub.f32 %v147, %v435
      %v452 = vsub.f32 %v148, %v436
      %v453 = vsub.f32 %v149, %v437
      %v454 = vsub.f32 %v150, %v438
      %v455 = vsub.f32 %v151, %v439
      %v456 = vsub.f32 %v152, %v440
      %v457 = vsub.f32 %v153, %v441
      %v458 = vsub.f32 %v154, %v442
      %v459 = vsub.f32 %v155, %v443
      %v460 = vsub.f32 %v156, %v444
      %v461 = vsub.f32 %v157, %v445
      %v462 = vsub.f32 %v158, %v446
      %v463 = vpack.c.bf16 %v447, %v447
      %v464 = vpack.c.bf16 %v448, %v448
      %v465 = vpack.c.bf16 %v449, %v449
      %v466 = vpack.c.bf16 %v450, %v450
      %v467 = vpack.c.bf16 %v451, %v451
      %v468 = vpack.c.bf16 %v452, %v452
      %v469 = vpack.c.bf16 %v453, %v453
      %v470 = vpack.c.bf16 %v454, %v454
      %v471 = vpack.c.bf16 %v455, %v455
      %v472 = vpack.c.bf16 %v456, %v456
      %v473 = vpack.c.bf16 %v457, %v457
      %v474 = vpack.c.bf16 %v458, %v458
      %v475 = vpack.c.bf16 %v459, %v459
      %v476 = vpack.c.bf16 %v460, %v460
      %v477 = vpack.c.bf16 %v461, %v461
      %v478 = vpack.c.bf16 %v462, %v462
      %v479 = vunpack.c.l.bf16 %v463
      %v480 = vunpack.c.l.bf16 %v464
      %v481 = vunpack.c.l.bf16 %v465
      %v482 = vunpack.c.l.bf16 %v466
      %v483 = vunpack.c.l.bf16 %v467
      %v484 = vunpack.c.l.bf16 %v468
      %v485 = vunpack.c.l.bf16 %v469
      %v486 = vunpack.c.l.bf16 %v470
      %v487 = vunpack.c.l.bf16 %v471
      %v488 = vunpack.c.l.bf16 %v472
      %v489 = vunpack.c.l.bf16 %v473
      %v490 = vunpack.c.l.bf16 %v474
      %v491 = vunpack.c.l.bf16 %v475
      %v492 = vunpack.c.l.bf16 %v476
      %v493 = vunpack.c.l.bf16 %v477
      %v494 = vunpack.c.l.bf16 %v478
      %v495 = vsub.f32 %v447, %v479
      %v496 = vsub.f32 %v448, %v480
      %v497 = vsub.f32 %v449, %v481
      %v498 = vsub.f32 %v450, %v482
      %v499 = vsub.f32 %v451, %v483
      %v500 = vsub.f32 %v452, %v484
      %v501 = vsub.f32 %v453, %v485
      %v502 = vsub.f32 %v454, %v486
      %v503 = vsub.f32 %v455, %v487
      %v504 = vsub.f32 %v456, %v488
      %v505 = vsub.f32 %v457, %v489
      %v506 = vsub.f32 %v458, %v490
      %v507 = vsub.f32 %v459, %v491
      %v508 = vsub.f32 %v460, %v492
      %v509 = vsub.f32 %v461, %v493
      %v510 = vsub.f32 %v462, %v494
      %v511 = vpack.c.bf16 %v495, %v495
      %v512 = vpack.c.bf16 %v496, %v496
      %v513 = vpack.c.bf16 %v497, %v497
      %v514 = vpack.c.bf16 %v498, %v498
      %v515 = vpack.c.bf16 %v499, %v499
      %v516 = vpack.c.bf16 %v500, %v500
      %v517 = vpack.c.bf16 %v501, %v501
      %v518 = vpack.c.bf16 %v502, %v502
      %v519 = vpack.c.bf16 %v503, %v503
      %v520 = vpack.c.bf16 %v504, %v504
      %v521 = vpack.c.bf16 %v505, %v505
      %v522 = vpack.c.bf16 %v506, %v506
      %v523 = vpack.c.bf16 %v507, %v507
      %v524 = vpack.c.bf16 %v508, %v508
      %v525 = vpack.c.bf16 %v509, %v509
      %v526 = vpack.c.bf16 %v510, %v510
      %v783 = vunpack.c.l.b16 %v159
      %v784 = vunpack.c.l.b16 %v160
      %v785 = vunpack.c.l.b16 %v161
      %v786 = vunpack.c.l.b16 %v162
      %v787 = vunpack.c.l.b16 %v163
      %v788 = vunpack.c.l.b16 %v164
      %v789 = vunpack.c.l.b16 %v165
      %v790 = vunpack.c.l.b16 %v166
      %v791 = vunpack.c.l.b16 %v167
      %v792 = vunpack.c.l.b16 %v168
      %v793 = vunpack.c.l.b16 %v169
      %v794 = vunpack.c.l.b16 %v170
      %v795 = vunpack.c.l.b16 %v171
      %v796 = vunpack.c.l.b16 %v172
      %v797 = vunpack.c.l.b16 %v173
      %v798 = vunpack.c.l.b16 %v174
      %v799 = vunpack.c.l.b16 %v175
      %v800 = vunpack.c.l.b16 %v176
      %v801 = vunpack.c.l.b16 %v177
      %v802 = vunpack.c.l.b16 %v178
      %v803 = vunpack.c.l.b16 %v179
      %v804 = vunpack.c.l.b16 %v180
      %v805 = vunpack.c.l.b16 %v181
      %v806 = vunpack.c.l.b16 %v182
      %v807 = vunpack.c.l.b16 %v183
      %v808 = vunpack.c.l.b16 %v184
      %v809 = vunpack.c.l.b16 %v185
      %v810 = vunpack.c.l.b16 %v186
      %v811 = vunpack.c.l.b16 %v187
      %v812 = vunpack.c.l.b16 %v188
      %v813 = vunpack.c.l.b16 %v189
      %v814 = vunpack.c.l.b16 %v190
      %v815 = vunpack.c.l.b16 %v191
      %v816 = vunpack.c.l.b16 %v192
      %v817 = vunpack.c.l.b16 %v193
      %v818 = vunpack.c.l.b16 %v194
      %v819 = vunpack.c.l.b16 %v195
      %v820 = vunpack.c.l.b16 %v196
      %v821 = vunpack.c.l.b16 %v197
      %v822 = vunpack.c.l.b16 %v198
      %v823 = vunpack.c.l.b16 %v199
      %v824 = vunpack.c.l.b16 %v200
      %v825 = vunpack.c.l.b16 %v201
      %v826 = vunpack.c.l.b16 %v202
      %v827 = vunpack.c.l.b16 %v203
      %v828 = vunpack.c.l.b16 %v204
      %v829 = vunpack.c.l.b16 %v205
      %v830 = vunpack.c.l.b16 %v206
      %v831 = vunpack.c.l.b16 %v207
      %v832 = vunpack.c.l.b16 %v208
      %v833 = vunpack.c.l.b16 %v209
      %v834 = vunpack.c.l.b16 %v210
      %v835 = vunpack.c.l.b16 %v211
      %v836 = vunpack.c.l.b16 %v212
      %v837 = vunpack.c.l.b16 %v213
      %v838 = vunpack.c.l.b16 %v214
      %v839 = vunpack.c.l.b16 %v215
      %v840 = vunpack.c.l.b16 %v216
      %v841 = vunpack.c.l.b16 %v217
      %v842 = vunpack.c.l.b16 %v218
      %v843 = vunpack.c.l.b16 %v219
      %v844 = vunpack.c.l.b16 %v220
      %v845 = vunpack.c.l.b16 %v221
      %v846 = vunpack.c.l.b16 %v222
      %v847 = vunpack.c.l.b16 %v223
      %v848 = vunpack.c.l.b16 %v224
      %v849 = vunpack.c.l.b16 %v225
      %v850 = vunpack.c.l.b16 %v226
      %v851 = vunpack.c.l.b16 %v227
      %v852 = vunpack.c.l.b16 %v228
      %v853 = vunpack.c.l.b16 %v229
      %v854 = vunpack.c.l.b16 %v230
      %v855 = vunpack.c.l.b16 %v231
      %v856 = vunpack.c.l.b16 %v232
      %v857 = vunpack.c.l.b16 %v233
      %v858 = vunpack.c.l.b16 %v234
      %v859 = vunpack.c.l.b16 %v235
      %v860 = vunpack.c.l.b16 %v236
      %v861 = vunpack.c.l.b16 %v237
      %v862 = vunpack.c.l.b16 %v238
      %v863 = vunpack.c.l.b16 %v239
      %v864 = vunpack.c.l.b16 %v240
      %v865 = vunpack.c.l.b16 %v241
      %v866 = vunpack.c.l.b16 %v242
      %v867 = vunpack.c.l.b16 %v243
      %v868 = vunpack.c.l.b16 %v244
      %v869 = vunpack.c.l.b16 %v245
      %v870 = vunpack.c.l.b16 %v246
      %v871 = vunpack.c.l.b16 %v247
      %v872 = vunpack.c.l.b16 %v248
      %v873 = vunpack.c.l.b16 %v249
      %v874 = vunpack.c.l.b16 %v250
      %v875 = vunpack.c.l.b16 %v251
      %v876 = vunpack.c.l.b16 %v252
      %v877 = vunpack.c.l.b16 %v253
      %v878 = vunpack.c.l.b16 %v254
      %v879 = vunpack.c.l.b16 %v255
      %v880 = vunpack.c.l.b16 %v256
      %v881 = vunpack.c.l.b16 %v257
      %v882 = vunpack.c.l.b16 %v258
      %v883 = vunpack.c.l.b16 %v259
      %v884 = vunpack.c.l.b16 %v260
      %v885 = vunpack.c.l.b16 %v261
      %v886 = vunpack.c.l.b16 %v262
      %v887 = vunpack.c.l.b16 %v263
      %v888 = vunpack.c.l.b16 %v264
      %v889 = vunpack.c.l.b16 %v265
      %v890 = vunpack.c.l.b16 %v266
      %v891 = vunpack.c.l.b16 %v267
      %v892 = vunpack.c.l.b16 %v268
      %v893 = vunpack.c.l.b16 %v269
      %v894 = vunpack.c.l.b16 %v270
      %v895 = vunpack.c.l.b16 %v271
      %v896 = vunpack.c.l.b16 %v272
      %v897 = vunpack.c.l.b16 %v273
      %v898 = vunpack.c.l.b16 %v274
      %v899 = vunpack.c.l.b16 %v275
      %v900 = vunpack.c.l.b16 %v276
      %v901 = vunpack.c.l.b16 %v277
      %v902 = vunpack.c.l.b16 %v278
      %v903 = vunpack.c.l.b16 %v279
      %v904 = vunpack.c.l.b16 %v280
      %v905 = vunpack.c.l.b16 %v281
      %v906 = vunpack.c.l.b16 %v282
      %v907 = vunpack.c.l.b16 %v283
      %v908 = vunpack.c.l.b16 %v284
      %v909 = vunpack.c.l.b16 %v285
      %v910 = vunpack.c.l.b16 %v286
      %v911 = vunpack.c.l.b16 %v287
      %v912 = vunpack.c.l.b16 %v288
      %v913 = vunpack.c.l.b16 %v289
      %v914 = vunpack.c.l.b16 %v290
      %v915 = vunpack.c.l.b16 %v291
      %v916 = vunpack.c.l.b16 %v292
      %v917 = vunpack.c.l.b16 %v293
      %v918 = vunpack.c.l.b16 %v294
      %v919 = vunpack.c.l.b16 %v295
      %v920 = vunpack.c.l.b16 %v296
      %v921 = vunpack.c.l.b16 %v297
      %v922 = vunpack.c.l.b16 %v298
      %v923 = vunpack.c.l.b16 %v299
      %v924 = vunpack.c.l.b16 %v300
      %v925 = vunpack.c.l.b16 %v301
      %v926 = vunpack.c.l.b16 %v302
      %v927 = vunpack.c.l.b16 %v303
      %v928 = vunpack.c.l.b16 %v304
      %v929 = vunpack.c.l.b16 %v305
      %v930 = vunpack.c.l.b16 %v306
      %v931 = vunpack.c.l.b16 %v307
      %v932 = vunpack.c.l.b16 %v308
      %v933 = vunpack.c.l.b16 %v309
      %v934 = vunpack.c.l.b16 %v310
      %v935 = vunpack.c.l.b16 %v311
      %v936 = vunpack.c.l.b16 %v312
      %v937 = vunpack.c.l.b16 %v313
      %v938 = vunpack.c.l.b16 %v314
      %v939 = vunpack.c.l.b16 %v315
      %v940 = vunpack.c.l.b16 %v316
      %v941 = vunpack.c.l.b16 %v317
      %v942 = vunpack.c.l.b16 %v318
      %v943 = vunpack.c.l.b16 %v319
      %v944 = vunpack.c.l.b16 %v320
      %v945 = vunpack.c.l.b16 %v321
      %v946 = vunpack.c.l.b16 %v322
      %v947 = vunpack.c.l.b16 %v323
      %v948 = vunpack.c.l.b16 %v324
      %v949 = vunpack.c.l.b16 %v325
      %v950 = vunpack.c.l.b16 %v326
      %v951 = vunpack.c.l.b16 %v327
      %v952 = vunpack.c.l.b16 %v328
      %v953 = vunpack.c.l.b16 %v329
      %v954 = vunpack.c.l.b16 %v330
      %v955 = vunpack.c.l.b16 %v331
      %v956 = vunpack.c.l.b16 %v332
      %v957 = vunpack.c.l.b16 %v333
      %v958 = vunpack.c.l.b16 %v334
      %v959 = vunpack.c.l.b16 %v335
      %v960 = vunpack.c.l.b16 %v336
      %v961 = vunpack.c.l.b16 %v337
      %v962 = vunpack.c.l.b16 %v338
      %v963 = vunpack.c.l.b16 %v339
      %v964 = vunpack.c.l.b16 %v340
      %v965 = vunpack.c.l.b16 %v341
      %v966 = vunpack.c.l.b16 %v342
      %v967 = vunpack.c.l.b16 %v343
      %v968 = vunpack.c.l.b16 %v344
      %v969 = vunpack.c.l.b16 %v345
      %v970 = vunpack.c.l.b16 %v346
      %v971 = vunpack.c.l.b16 %v347
      %v972 = vunpack.c.l.b16 %v348
      %v973 = vunpack.c.l.b16 %v349
      %v974 = vunpack.c.l.b16 %v350
      %v975 = vunpack.c.l.b16 %v351
      %v976 = vunpack.c.l.b16 %v352
      %v977 = vunpack.c.l.b16 %v353
      %v978 = vunpack.c.l.b16 %v354
      %v979 = vunpack.c.l.b16 %v355
      %v980 = vunpack.c.l.b16 %v356
      %v981 = vunpack.c.l.b16 %v357
      %v982 = vunpack.c.l.b16 %v358
      %v983 = vunpack.c.l.b16 %v359
      %v984 = vunpack.c.l.b16 %v360
      %v985 = vunpack.c.l.b16 %v361
      %v986 = vunpack.c.l.b16 %v362
      %v987 = vunpack.c.l.b16 %v363
      %v988 = vunpack.c.l.b16 %v364
      %v989 = vunpack.c.l.b16 %v365
      %v990 = vunpack.c.l.b16 %v366
      %v991 = vunpack.c.l.b16 %v367
      %v992 = vunpack.c.l.b16 %v368
      %v993 = vunpack.c.l.b16 %v369
      %v994 = vunpack.c.l.b16 %v370
      %v995 = vunpack.c.l.b16 %v371
      %v996 = vunpack.c.l.b16 %v372
      %v997 = vunpack.c.l.b16 %v373
      %v998 = vunpack.c.l.b16 %v374
      %v999 = vunpack.c.l.b16 %v375
      %v1000 = vunpack.c.l.b16 %v376
      %v1001 = vunpack.c.l.b16 %v377
      %v1002 = vunpack.c.l.b16 %v378
      %v1003 = vunpack.c.l.b16 %v379
      %v1004 = vunpack.c.l.b16 %v380
      %v1005 = vunpack.c.l.b16 %v381
      %v1006 = vunpack.c.l.b16 %v382
      %v1007 = vunpack.c.l.b16 %v383
      %v1008 = vunpack.c.l.b16 %v384
      %v1009 = vunpack.c.l.b16 %v385
      %v1010 = vunpack.c.l.b16 %v386
      %v1011 = vunpack.c.l.b16 %v387
      %v1012 = vunpack.c.l.b16 %v388
      %v1013 = vunpack.c.l.b16 %v389
      %v1014 = vunpack.c.l.b16 %v390
      %v1015 = vunpack.c.l.b16 %v391
      %v1016 = vunpack.c.l.b16 %v392
      %v1017 = vunpack.c.l.b16 %v393
      %v1018 = vunpack.c.l.b16 %v394
      %v1019 = vunpack.c.l.b16 %v395
      %v1020 = vunpack.c.l.b16 %v396
      %v1021 = vunpack.c.l.b16 %v397
      %v1022 = vunpack.c.l.b16 %v398
      %v1023 = vunpack.c.l.b16 %v399
      %v1024 = vunpack.c.l.b16 %v400
      %v1025 = vunpack.c.l.b16 %v401
      %v1026 = vunpack.c.l.b16 %v402
      %v1027 = vunpack.c.l.b16 %v403
      %v1028 = vunpack.c.l.b16 %v404
      %v1029 = vunpack.c.l.b16 %v405
      %v1030 = vunpack.c.l.b16 %v406
      %v1031 = vunpack.c.l.b16 %v407
      %v1032 = vunpack.c.l.b16 %v408
      %v1033 = vunpack.c.l.b16 %v409
      %v1034 = vunpack.c.l.b16 %v410
      %v1035 = vunpack.c.l.b16 %v411
      %v1036 = vunpack.c.l.b16 %v412
      %v1037 = vunpack.c.l.b16 %v413
      %v1038 = vunpack.c.l.b16 %v414
      %v1039 = vpack.c.b16 %v784, %v783
      %v1040 = vpack.c.b16 %v786, %v785
      %v1041 = vpack.c.b16 %v788, %v787
      %v1042 = vpack.c.b16 %v790, %v789
      %v1043 = vpack.c.b16 %v792, %v791
      %v1044 = vpack.c.b16 %v794, %v793
      %v1045 = vpack.c.b16 %v796, %v795
      %v1046 = vpack.c.b16 %v798, %v797
      %v1047 = vpack.c.b16 %v800, %v799
      %v1048 = vpack.c.b16 %v802, %v801
      %v1049 = vpack.c.b16 %v804, %v803
      %v1050 = vpack.c.b16 %v806, %v805
      %v1051 = vpack.c.b16 %v808, %v807
      %v1052 = vpack.c.b16 %v810, %v809
      %v1053 = vpack.c.b16 %v812, %v811
      %v1054 = vpack.c.b16 %v814, %v813
      %v1055 = vpack.c.b16 %v816, %v815
      %v1056 = vpack.c.b16 %v818, %v817
      %v1057 = vpack.c.b16 %v820, %v819
      %v1058 = vpack.c.b16 %v822, %v821
      %v1059 = vpack.c.b16 %v824, %v823
      %v1060 = vpack.c.b16 %v826, %v825
      %v1061 = vpack.c.b16 %v828, %v827
      %v1062 = vpack.c.b16 %v830, %v829
      %v1063 = vpack.c.b16 %v832, %v831
      %v1064 = vpack.c.b16 %v834, %v833
      %v1065 = vpack.c.b16 %v836, %v835
      %v1066 = vpack.c.b16 %v838, %v837
      %v1067 = vpack.c.b16 %v840, %v839
      %v1068 = vpack.c.b16 %v842, %v841
      %v1069 = vpack.c.b16 %v844, %v843
      %v1070 = vpack.c.b16 %v846, %v845
      %v1071 = vpack.c.b16 %v848, %v847
      %v1072 = vpack.c.b16 %v850, %v849
      %v1073 = vpack.c.b16 %v852, %v851
      %v1074 = vpack.c.b16 %v854, %v853
      %v1075 = vpack.c.b16 %v856, %v855
      %v1076 = vpack.c.b16 %v858, %v857
      %v1077 = vpack.c.b16 %v860, %v859
      %v1078 = vpack.c.b16 %v862, %v861
      %v1079 = vpack.c.b16 %v864, %v863
      %v1080 = vpack.c.b16 %v866, %v865
      %v1081 = vpack.c.b16 %v868, %v867
      %v1082 = vpack.c.b16 %v870, %v869
      %v1083 = vpack.c.b16 %v872, %v871
      %v1084 = vpack.c.b16 %v874, %v873
      %v1085 = vpack.c.b16 %v876, %v875
      %v1086 = vpack.c.b16 %v878, %v877
      %v1087 = vpack.c.b16 %v880, %v879
      %v1088 = vpack.c.b16 %v882, %v881
      %v1089 = vpack.c.b16 %v884, %v883
      %v1090 = vpack.c.b16 %v886, %v885
      %v1091 = vpack.c.b16 %v888, %v887
      %v1092 = vpack.c.b16 %v890, %v889
      %v1093 = vpack.c.b16 %v892, %v891
      %v1094 = vpack.c.b16 %v894, %v893
      %v1095 = vpack.c.b16 %v896, %v895
      %v1096 = vpack.c.b16 %v898, %v897
      %v1097 = vpack.c.b16 %v900, %v899
      %v1098 = vpack.c.b16 %v902, %v901
      %v1099 = vpack.c.b16 %v904, %v903
      %v1100 = vpack.c.b16 %v906, %v905
      %v1101 = vpack.c.b16 %v908, %v907
      %v1102 = vpack.c.b16 %v910, %v909
      %v1103 = vpack.c.b16 %v912, %v911
      %v1104 = vpack.c.b16 %v914, %v913
      %v1105 = vpack.c.b16 %v916, %v915
      %v1106 = vpack.c.b16 %v918, %v917
      %v1107 = vpack.c.b16 %v920, %v919
      %v1108 = vpack.c.b16 %v922, %v921
      %v1109 = vpack.c.b16 %v924, %v923
      %v1110 = vpack.c.b16 %v926, %v925
      %v1111 = vpack.c.b16 %v928, %v927
      %v1112 = vpack.c.b16 %v930, %v929
      %v1113 = vpack.c.b16 %v932, %v931
      %v1114 = vpack.c.b16 %v934, %v933
      %v1115 = vpack.c.b16 %v936, %v935
      %v1116 = vpack.c.b16 %v938, %v937
      %v1117 = vpack.c.b16 %v940, %v939
      %v1118 = vpack.c.b16 %v942, %v941
      %v1119 = vpack.c.b16 %v944, %v943
      %v1120 = vpack.c.b16 %v946, %v945
      %v1121 = vpack.c.b16 %v948, %v947
      %v1122 = vpack.c.b16 %v950, %v949
      %v1123 = vpack.c.b16 %v952, %v951
      %v1124 = vpack.c.b16 %v954, %v953
      %v1125 = vpack.c.b16 %v956, %v955
      %v1126 = vpack.c.b16 %v958, %v957
      %v1127 = vpack.c.b16 %v960, %v959
      %v1128 = vpack.c.b16 %v962, %v961
      %v1129 = vpack.c.b16 %v964, %v963
      %v1130 = vpack.c.b16 %v966, %v965
      %v1131 = vpack.c.b16 %v968, %v967
      %v1132 = vpack.c.b16 %v970, %v969
      %v1133 = vpack.c.b16 %v972, %v971
      %v1134 = vpack.c.b16 %v974, %v973
      %v1135 = vpack.c.b16 %v976, %v975
      %v1136 = vpack.c.b16 %v978, %v977
      %v1137 = vpack.c.b16 %v980, %v979
      %v1138 = vpack.c.b16 %v982, %v981
      %v1139 = vpack.c.b16 %v984, %v983
      %v1140 = vpack.c.b16 %v986, %v985
      %v1141 = vpack.c.b16 %v988, %v987
      %v1142 = vpack.c.b16 %v990, %v989
      %v1143 = vpack.c.b16 %v992, %v991
      %v1144 = vpack.c.b16 %v994, %v993
      %v1145 = vpack.c.b16 %v996, %v995
      %v1146 = vpack.c.b16 %v998, %v997
      %v1147 = vpack.c.b16 %v1000, %v999
      %v1148 = vpack.c.b16 %v1002, %v1001
      %v1149 = vpack.c.b16 %v1004, %v1003
      %v1150 = vpack.c.b16 %v1006, %v1005
      %v1151 = vpack.c.b16 %v1008, %v1007
      %v1152 = vpack.c.b16 %v1010, %v1009
      %v1153 = vpack.c.b16 %v1012, %v1011
      %v1154 = vpack.c.b16 %v1014, %v1013
      %v1155 = vpack.c.b16 %v1016, %v1015
      %v1156 = vpack.c.b16 %v1018, %v1017
      %v1157 = vpack.c.b16 %v1020, %v1019
      %v1158 = vpack.c.b16 %v1022, %v1021
      %v1159 = vpack.c.b16 %v1024, %v1023
      %v1160 = vpack.c.b16 %v1026, %v1025
      %v1161 = vpack.c.b16 %v1028, %v1027
      %v1162 = vpack.c.b16 %v1030, %v1029
      %v1163 = vpack.c.b16 %v1032, %v1031
      %v1164 = vpack.c.b16 %v1034, %v1033
      %v1165 = vpack.c.b16 %v1036, %v1035
      %v1166 = vpack.c.b16 %v1038, %v1037
      %1295 = vmatprep.subr.bf16.mxu0 0
      %1296 = vmatpush1.bf16.msra.mxu0 %v1039
      %1297 = vmatprep.subr.bf16.mxu0 0
      %1298 = vmatpush1.bf16.msra.mxu0 %v1040
      %1299 = vmatprep.subr.bf16.mxu0 0
      %1300 = vmatpush1.bf16.msra.mxu0 %v1041
      %1301 = vmatprep.subr.bf16.mxu0 0
      %1302 = vmatpush1.bf16.msra.mxu0 %v1042
      %1303 = vmatprep.subr.bf16.mxu0 0
      %1304 = vmatpush1.bf16.msra.mxu0 %v1043
      %1305 = vmatprep.subr.bf16.mxu0 0
      %1306 = vmatpush1.bf16.msra.mxu0 %v1044
      %1307 = vmatprep.subr.bf16.mxu0 0
      %1308 = vmatpush1.bf16.msra.mxu0 %v1045
      %1309 = vmatprep.subr.bf16.mxu0 0
      %1310 = vmatpush1.bf16.msra.mxu0 %v1046
      %1311 = vmatprep.subr.bf16.mxu0 0
      %1312 = vmatpush1.bf16.msra.mxu0 %v1047
      %1313 = vmatprep.subr.bf16.mxu0 0
      %1314 = vmatpush1.bf16.msra.mxu0 %v1048
      %1315 = vmatprep.subr.bf16.mxu0 0
      %1316 = vmatpush1.bf16.msra.mxu0 %v1049
      %1317 = vmatprep.subr.bf16.mxu0 0
      %1318 = vmatpush1.bf16.msra.mxu0 %v1050
      %1319 = vmatprep.subr.bf16.mxu0 0
      %1320 = vmatpush1.bf16.msra.mxu0 %v1051
      %1321 = vmatprep.subr.bf16.mxu0 0
      %1322 = vmatpush1.bf16.msra.mxu0 %v1052
      %1323 = vmatprep.subr.bf16.mxu0 0
      %1324 = vmatpush1.bf16.msra.mxu0 %v1053
      %1325 = vmatprep.subr.bf16.mxu0 0
      %1326 = vmatpush1.bf16.msra.mxu0 %v1054
      %1327 = vmatprep.mubr.bf16.mxu0 %v464
      %1328 = vmatmul.mubr.bf16.gmra.mrb[0].mxu0 %v463
      %v1329 = vpop.f32.mrb[0].mxu0
      %v1330 = vadd.f32 0.0, %v1329
      %v1331 = vpop.f32.mrb[0].mxu0
      %v1332 = vpop.f32.mrb[0].mxu0
      %v1333 = vpop.f32.mrb[0].mxu0
      %1334 = vdwg.mxu0
      %1335 = vmatprep.subr.bf16.mxu0 0
      %1336 = vmatpush1.bf16.msra.mxu0 %v1055
      %1337 = vmatprep.subr.bf16.mxu0 0
      %1338 = vmatpush1.bf16.msra.mxu0 %v1056
      %1339 = vmatprep.subr.bf16.mxu0 0
      %1340 = vmatpush1.bf16.msra.mxu0 %v1057
      %1341 = vmatprep.subr.bf16.mxu0 0
      %1342 = vmatpush1.bf16.msra.mxu0 %v1058
      %1343 = vmatprep.subr.bf16.mxu0 0
      %1344 = vmatpush1.bf16.msra.mxu0 %v1059
      %1345 = vmatprep.subr.bf16.mxu0 0
      %1346 = vmatpush1.bf16.msra.mxu0 %v1060
      %1347 = vmatprep.subr.bf16.mxu0 0
      %1348 = vmatpush1.bf16.msra.mxu0 %v1061
      %1349 = vmatprep.subr.bf16.mxu0 0
      %1350 = vmatpush1.bf16.msra.mxu0 %v1062
      %1351 = vmatprep.subr.bf16.mxu0 0
      %1352 = vmatpush1.bf16.msra.mxu0 %v1063
      %1353 = vmatprep.subr.bf16.mxu0 0
      %1354 = vmatpush1.bf16.msra.mxu0 %v1064
      %1355 = vmatprep.subr.bf16.mxu0 0
      %1356 = vmatpush1.bf16.msra.mxu0 %v1065
      %1357 = vmatprep.subr.bf16.mxu0 0
      %1358 = vmatpush1.bf16.msra.mxu0 %v1066
      %1359 = vmatprep.subr.bf16.mxu0 0
      %1360 = vmatpush1.bf16.msra.mxu0 %v1067
      %1361 = vmatprep.subr.bf16.mxu0 0
      %1362 = vmatpush1.bf16.msra.mxu0 %v1068
      %1363 = vmatprep.subr.bf16.mxu0 0
      %1364 = vmatpush1.bf16.msra.mxu0 %v1069
      %1365 = vmatprep.subr.bf16.mxu0 0
      %1366 = vmatpush1.bf16.msra.mxu0 %v1070
      %1367 = vmatprep.mubr.bf16.mxu0 %v466
      %1368 = vmatmul.mubr.bf16.gmra.mrb[0].mxu0 %v465
      %v1369 = vpop.f32.mrb[0].mxu0
      %v1370 = vadd.f32 %v1330, %v1369
      %v1371 = vpop.f32.mrb[0].mxu0
      %v1372 = vpop.f32.mrb[0].mxu0
      %v1373 = vpop.f32.mrb[0].mxu0
      %1374 = vdwg.mxu0
      %1375 = vmatprep.subr.bf16.mxu0 0
      %1376 = vmatpush1.bf16.msra.mxu0 %v1071
      %1377 = vmatprep.subr.bf16.mxu0 0
      %1378 = vmatpush1.bf16.msra.mxu0 %v1072
      %1379 = vmatprep.subr.bf16.mxu0 0
      %1380 = vmatpush1.bf16.msra.mxu0 %v1073
      %1381 = vmatprep.subr.bf16.mxu0 0
      %1382 = vmatpush1.bf16.msra.mxu0 %v1074
      %1383 = vmatprep.subr.bf16.mxu0 0
      %1384 = vmatpush1.bf16.msra.mxu0 %v1075
      %1385 = vmatprep.subr.bf16.mxu0 0
      %1386 = vmatpush1.bf16.msra.mxu0 %v1076
      %1387 = vmatprep.subr.bf16.mxu0 0
      %1388 = vmatpush1.bf16.msra.mxu0 %v1077
      %1389 = vmatprep.subr.bf16.mxu0 0
      %1390 = vmatpush1.bf16.msra.mxu0 %v1078
      %1391 = vmatprep.subr.bf16.mxu0 0
      %1392 = vmatpush1.bf16.msra.mxu0 %v1079
      %1393 = vmatprep.subr.bf16.mxu0 0
      %1394 = vmatpush1.bf16.msra.mxu0 %v1080
      %1395 = vmatprep.subr.bf16.mxu0 0
      %1396 = vmatpush1.bf16.msra.mxu0 %v1081
      %1397 = vmatprep.subr.bf16.mxu0 0
      %1398 = vmatpush1.bf16.msra.mxu0 %v1082
      %1399 = vmatprep.subr.bf16.mxu0 0
      %1400 = vmatpush1.bf16.msra.mxu0 %v1083
      %1401 = vmatprep.subr.bf16.mxu0 0
      %1402 = vmatpush1.bf16.msra.mxu0 %v1084
      %1403 = vmatprep.subr.bf16.mxu0 0
      %1404 = vmatpush1.bf16.msra.mxu0 %v1085
      %1405 = vmatprep.subr.bf16.mxu0 0
      %1406 = vmatpush1.bf16.msra.mxu0 %v1086
      %1407 = vmatprep.mubr.bf16.mxu0 %v468
      %1408 = vmatmul.mubr.bf16.gmra.mrb[0].mxu0 %v467
      %v1409 = vpop.f32.mrb[0].mxu0
      %v1410 = vadd.f32 %v1370, %v1409
      %v1411 = vpop.f32.mrb[0].mxu0
      %v1412 = vpop.f32.mrb[0].mxu0
      %v1413 = vpop.f32.mrb[0].mxu0
      %1414 = vdwg.mxu0
      %1415 = vmatprep.subr.bf16.mxu0 0
      %1416 = vmatpush1.bf16.msra.mxu0 %v1087
      %1417 = vmatprep.subr.bf16.mxu0 0
      %1418 = vmatpush1.bf16.msra.mxu0 %v1088
      %1419 = vmatprep.subr.bf16.mxu0 0
      %1420 = vmatpush1.bf16.msra.mxu0 %v1089
      %1421 = vmatprep.subr.bf16.mxu0 0
      %1422 = vmatpush1.bf16.msra.mxu0 %v1090
      %1423 = vmatprep.subr.bf16.mxu0 0
      %1424 = vmatpush1.bf16.msra.mxu0 %v1091
      %1425 = vmatprep.subr.bf16.mxu0 0
      %1426 = vmatpush1.bf16.msra.mxu0 %v1092
      %1427 = vmatprep.subr.bf16.mxu0 0
      %1428 = vmatpush1.bf16.msra.mxu0 %v1093
      %1429 = vmatprep.subr.bf16.mxu0 0
      %1430 = vmatpush1.bf16.msra.mxu0 %v1094
      %1431 = vmatprep.subr.bf16.mxu0 0
      %1432 = vmatpush1.bf16.msra.mxu0 %v1095
      %1433 = vmatprep.subr.bf16.mxu0 0
      %1434 = vmatpush1.bf16.msra.mxu0 %v1096
      %1435 = vmatprep.subr.bf16.mxu0 0
      %1436 = vmatpush1.bf16.msra.mxu0 %v1097
      %1437 = vmatprep.subr.bf16.mxu0 0
      %1438 = vmatpush1.bf16.msra.mxu0 %v1098
      %1439 = vmatprep.subr.bf16.mxu0 0
      %1440 = vmatpush1.bf16.msra.mxu0 %v1099
      %1441 = vmatprep.subr.bf16.mxu0 0
      %1442 = vmatpush1.bf16.msra.mxu0 %v1100
      %1443 = vmatprep.subr.bf16.mxu0 0
      %1444 = vmatpush1.bf16.msra.mxu0 %v1101
      %1445 = vmatprep.subr.bf16.mxu0 0
      %1446 = vmatpush1.bf16.msra.mxu0 %v1102
      %1447 = vmatprep.mubr.bf16.mxu0 %v470
      %1448 = vmatmul.mubr.bf16.gmra.mrb[0].mxu0 %v469
      %v1449 = vpop.f32.mrb[0].mxu0
      %v1450 = vadd.f32 %v1410, %v1449
      %v1451 = vpop.f32.mrb[0].mxu0
      %v1452 = vpop.f32.mrb[0].mxu0
      %v1453 = vpop.f32.mrb[0].mxu0
      %1454 = vdwg.mxu0
      %1455 = vmatprep.subr.bf16.mxu0 0
      %1456 = vmatpush1.bf16.msra.mxu0 %v1103
      %1457 = vmatprep.subr.bf16.mxu0 0
      %1458 = vmatpush1.bf16.msra.mxu0 %v1104
      %1459 = vmatprep.subr.bf16.mxu0 0
      %1460 = vmatpush1.bf16.msra.mxu0 %v1105
      %1461 = vmatprep.subr.bf16.mxu0 0
      %1462 = vmatpush1.bf16.msra.mxu0 %v1106
      %1463 = vmatprep.subr.bf16.mxu0 0
      %1464 = vmatpush1.bf16.msra.mxu0 %v1107
      %1465 = vmatprep.subr.bf16.mxu0 0
      %1466 = vmatpush1.bf16.msra.mxu0 %v1108
      %1467 = vmatprep.subr.bf16.mxu0 0
      %1468 = vmatpush1.bf16.msra.mxu0 %v1109
      %1469 = vmatprep.subr.bf16.mxu0 0
      %1470 = vmatpush1.bf16.msra.mxu0 %v1110
      %1471 = vmatprep.subr.bf16.mxu0 0
      %1472 = vmatpush1.bf16.msra.mxu0 %v1111
      %1473 = vmatprep.subr.bf16.mxu0 0
      %1474 = vmatpush1.bf16.msra.mxu0 %v1112
      %1475 = vmatprep.subr.bf16.mxu0 0
      %1476 = vmatpush1.bf16.msra.mxu0 %v1113
      %1477 = vmatprep.subr.bf16.mxu0 0
      %1478 = vmatpush1.bf16.msra.mxu0 %v1114
      %1479 = vmatprep.subr.bf16.mxu0 0
      %1480 = vmatpush1.bf16.msra.mxu0 %v1115
      %1481 = vmatprep.subr.bf16.mxu0 0
      %1482 = vmatpush1.bf16.msra.mxu0 %v1116
      %1483 = vmatprep.subr.bf16.mxu0 0
      %1484 = vmatpush1.bf16.msra.mxu0 %v1117
      %1485 = vmatprep.subr.bf16.mxu0 0
      %1486 = vmatpush1.bf16.msra.mxu0 %v1118
      %1487 = vmatprep.mubr.bf16.mxu0 %v472
      %1488 = vmatmul.mubr.bf16.gmra.mrb[0].mxu0 %v471
      %v1489 = vpop.f32.mrb[0].mxu0
      %v1490 = vadd.f32 %v1450, %v1489
      %v1491 = vpop.f32.mrb[0].mxu0
      %v1492 = vpop.f32.mrb[0].mxu0
      %v1493 = vpop.f32.mrb[0].mxu0
      %1494 = vdwg.mxu0
      %1495 = vmatprep.subr.bf16.mxu0 0
      %1496 = vmatpush1.bf16.msra.mxu0 %v1119
      %1497 = vmatprep.subr.bf16.mxu0 0
      %1498 = vmatpush1.bf16.msra.mxu0 %v1120
      %1499 = vmatprep.subr.bf16.mxu0 0
      %1500 = vmatpush1.bf16.msra.mxu0 %v1121
      %1501 = vmatprep.subr.bf16.mxu0 0
      %1502 = vmatpush1.bf16.msra.mxu0 %v1122
      %1503 = vmatprep.subr.bf16.mxu0 0
      %1504 = vmatpush1.bf16.msra.mxu0 %v1123
      %1505 = vmatprep.subr.bf16.mxu0 0
      %1506 = vmatpush1.bf16.msra.mxu0 %v1124
      %1507 = vmatprep.subr.bf16.mxu0 0
      %1508 = vmatpush1.bf16.msra.mxu0 %v1125
      %1509 = vmatprep.subr.bf16.mxu0 0
      %1510 = vmatpush1.bf16.msra.mxu0 %v1126
      %1511 = vmatprep.subr.bf16.mxu0 0
      %1512 = vmatpush1.bf16.msra.mxu0 %v1127
      %1513 = vmatprep.subr.bf16.mxu0 0
      %1514 = vmatpush1.bf16.msra.mxu0 %v1128
      %1515 = vmatprep.subr.bf16.mxu0 0
      %1516 = vmatpush1.bf16.msra.mxu0 %v1129
      %1517 = vmatprep.subr.bf16.mxu0 0
      %1518 = vmatpush1.bf16.msra.mxu0 %v1130
      %1519 = vmatprep.subr.bf16.mxu0 0
      %1520 = vmatpush1.bf16.msra.mxu0 %v1131
      %1521 = vmatprep.subr.bf16.mxu0 0
      %1522 = vmatpush1.bf16.msra.mxu0 %v1132
      %1523 = vmatprep.subr.bf16.mxu0 0
      %1524 = vmatpush1.bf16.msra.mxu0 %v1133
      %1525 = vmatprep.subr.bf16.mxu0 0
      %1526 = vmatpush1.bf16.msra.mxu0 %v1134
      %1527 = vmatprep.mubr.bf16.mxu0 %v474
      %1528 = vmatmul.mubr.bf16.gmra.mrb[0].mxu0 %v473
      %v1529 = vpop.f32.mrb[0].mxu0
      %v1530 = vadd.f32 %v1490, %v1529
      %v1531 = vpop.f32.mrb[0].mxu0
      %v1532 = vpop.f32.mrb[0].mxu0
      %v1533 = vpop.f32.mrb[0].mxu0
      %1534 = vdwg.mxu0
      %1535 = vmatprep.subr.bf16.mxu0 0
      %1536 = vmatpush1.bf16.msra.mxu0 %v1135
      %1537 = vmatprep.subr.bf16.mxu0 0
      %1538 = vmatpush1.bf16.msra.mxu0 %v1136
      %1539 = vmatprep.subr.bf16.mxu0 0
      %1540 = vmatpush1.bf16.msra.mxu0 %v1137
      %1541 = vmatprep.subr.bf16.mxu0 0
      %1542 = vmatpush1.bf16.msra.mxu0 %v1138
      %1543 = vmatprep.subr.bf16.mxu0 0
      %1544 = vmatpush1.bf16.msra.mxu0 %v1139
      %1545 = vmatprep.subr.bf16.mxu0 0
      %1546 = vmatpush1.bf16.msra.mxu0 %v1140
      %1547 = vmatprep.subr.bf16.mxu0 0
      %1548 = vmatpush1.bf16.msra.mxu0 %v1141
      %1549 = vmatprep.subr.bf16.mxu0 0
      %1550 = vmatpush1.bf16.msra.mxu0 %v1142
      %1551 = vmatprep.subr.bf16.mxu0 0
      %1552 = vmatpush1.bf16.msra.mxu0 %v1143
      %1553 = vmatprep.subr.bf16.mxu0 0
      %1554 = vmatpush1.bf16.msra.mxu0 %v1144
      %1555 = vmatprep.subr.bf16.mxu0 0
      %1556 = vmatpush1.bf16.msra.mxu0 %v1145
      %1557 = vmatprep.subr.bf16.mxu0 0
      %1558 = vmatpush1.bf16.msra.mxu0 %v1146
      %1559 = vmatprep.subr.bf16.mxu0 0
      %1560 = vmatpush1.bf16.msra.mxu0 %v1147
      %1561 = vmatprep.subr.bf16.mxu0 0
      %1562 = vmatpush1.bf16.msra.mxu0 %v1148
      %1563 = vmatprep.subr.bf16.mxu0 0
      %1564 = vmatpush1.bf16.msra.mxu0 %v1149
      %1565 = vmatprep.subr.bf16.mxu0 0
      %1566 = vmatpush1.bf16.msra.mxu0 %v1150
      %1567 = vmatprep.mubr.bf16.mxu0 %v476
      %1568 = vmatmul.mubr.bf16.gmra.mrb[0].mxu0 %v475
      %v1569 = vpop.f32.mrb[0].mxu0
      %v1570 = vadd.f32 %v1530, %v1569
      %v1571 = vpop.f32.mrb[0].mxu0
      %v1572 = vpop.f32.mrb[0].mxu0
      %v1573 = vpop.f32.mrb[0].mxu0
      %1574 = vdwg.mxu0
      %1575 = vmatprep.subr.bf16.mxu0 0
      %1576 = vmatpush1.bf16.msra.mxu0 %v1151
      %1577 = vmatprep.subr.bf16.mxu0 0
      %1578 = vmatpush1.bf16.msra.mxu0 %v1152
      %1579 = vmatprep.subr.bf16.mxu0 0
      %1580 = vmatpush1.bf16.msra.mxu0 %v1153
      %1581 = vmatprep.subr.bf16.mxu0 0
      %1582 = vmatpush1.bf16.msra.mxu0 %v1154
      %1583 = vmatprep.subr.bf16.mxu0 0
      %1584 = vmatpush1.bf16.msra.mxu0 %v1155
      %1585 = vmatprep.subr.bf16.mxu0 0
      %1586 = vmatpush1.bf16.msra.mxu0 %v1156
      %1587 = vmatprep.subr.bf16.mxu0 0
      %1588 = vmatpush1.bf16.msra.mxu0 %v1157
      %1589 = vmatprep.subr.bf16.mxu0 0
      %1590 = vmatpush1.bf16.msra.mxu0 %v1158
      %1591 = vmatprep.subr.bf16.mxu0 0
      %1592 = vmatpush1.bf16.msra.mxu0 %v1159
      %1593 = vmatprep.subr.bf16.mxu0 0
      %1594 = vmatpush1.bf16.msra.mxu0 %v1160
      %1595 = vmatprep.subr.bf16.mxu0 0
      %1596 = vmatpush1.bf16.msra.mxu0 %v1161
      %1597 = vmatprep.subr.bf16.mxu0 0
      %1598 = vmatpush1.bf16.msra.mxu0 %v1162
      %1599 = vmatprep.subr.bf16.mxu0 0
      %1600 = vmatpush1.bf16.msra.mxu0 %v1163
      %1601 = vmatprep.subr.bf16.mxu0 0
      %1602 = vmatpush1.bf16.msra.mxu0 %v1164
      %1603 = vmatprep.subr.bf16.mxu0 0
      %1604 = vmatpush1.bf16.msra.mxu0 %v1165
      %1605 = vmatprep.subr.bf16.mxu0 0
      %1606 = vmatpush1.bf16.msra.mxu0 %v1166
      %1607 = vmatprep.mubr.bf16.mxu0 %v478
      %1608 = vmatmul.mubr.bf16.gmra.mrb[0].mxu0 %v477
      %v1609 = vpop.f32.mrb[0].mxu0
      %v1610 = vadd.f32 %v1570, %v1609
      %v1611 = vpop.f32.mrb[0].mxu0
      %v1612 = vpop.f32.mrb[0].mxu0
      %v1613 = vpop.f32.mrb[0].mxu0
      %1614 = vdwg.mxu0
      %1615 = vmatprep.subr.bf16.mxu0 0
      %1616 = vmatpush1.bf16.msra.mxu0 %v1039
      %1617 = vmatprep.subr.bf16.mxu0 0
      %1618 = vmatpush1.bf16.msra.mxu0 %v1040
      %1619 = vmatprep.subr.bf16.mxu0 0
      %1620 = vmatpush1.bf16.msra.mxu0 %v1041
      %1621 = vmatprep.subr.bf16.mxu0 0
      %1622 = vmatpush1.bf16.msra.mxu0 %v1042
      %1623 = vmatprep.subr.bf16.mxu0 0
      %1624 = vmatpush1.bf16.msra.mxu0 %v1043
      %1625 = vmatprep.subr.bf16.mxu0 0
      %1626 = vmatpush1.bf16.msra.mxu0 %v1044
      %1627 = vmatprep.subr.bf16.mxu0 0
      %1628 = vmatpush1.bf16.msra.mxu0 %v1045
      %1629 = vmatprep.subr.bf16.mxu0 0
      %1630 = vmatpush1.bf16.msra.mxu0 %v1046
      %1631 = vmatprep.subr.bf16.mxu0 0
      %1632 = vmatpush1.bf16.msra.mxu0 %v1047
      %1633 = vmatprep.subr.bf16.mxu0 0
      %1634 = vmatpush1.bf16.msra.mxu0 %v1048
      %1635 = vmatprep.subr.bf16.mxu0 0
      %1636 = vmatpush1.bf16.msra.mxu0 %v1049
      %1637 = vmatprep.subr.bf16.mxu0 0
      %1638 = vmatpush1.bf16.msra.mxu0 %v1050
      %1639 = vmatprep.subr.bf16.mxu0 0
      %1640 = vmatpush1.bf16.msra.mxu0 %v1051
      %1641 = vmatprep.subr.bf16.mxu0 0
      %1642 = vmatpush1.bf16.msra.mxu0 %v1052
      %1643 = vmatprep.subr.bf16.mxu0 0
      %1644 = vmatpush1.bf16.msra.mxu0 %v1053
      %1645 = vmatprep.subr.bf16.mxu0 0
      %1646 = vmatpush1.bf16.msra.mxu0 %v1054
      %1647 = vmatprep.mubr.bf16.mxu0 %v416
      %1648 = vmatmul.mubr.bf16.gmra.mrb[0].mxu0 %v415
      %v1649 = vpop.f32.mrb[0].mxu0
      %v1650 = vadd.f32 %v1610, %v1649
      %v1651 = vpop.f32.mrb[0].mxu0
      %v1652 = vpop.f32.mrb[0].mxu0
      %v1653 = vpop.f32.mrb[0].mxu0
      %1654 = vdwg.mxu0
      %1655 = vmatprep.subr.bf16.mxu0 0
      %1656 = vmatpush1.bf16.msra.mxu0 %v1055
      %1657 = vmatprep.subr.bf16.mxu0 0
      %1658 = vmatpush1.bf16.msra.mxu0 %v1056
      %1659 = vmatprep.subr.bf16.mxu0 0
      %1660 = vmatpush1.bf16.msra.mxu0 %v1057
      %1661 = vmatprep.subr.bf16.mxu0 0
      %1662 = vmatpush1.bf16.msra.mxu0 %v1058
      %1663 = vmatprep.subr.bf16.mxu0 0
      %1664 = vmatpush1.bf16.msra.mxu0 %v1059
      %1665 = vmatprep.subr.bf16.mxu0 0
      %1666 = vmatpush1.bf16.msra.mxu0 %v1060
      %1667 = vmatprep.subr.bf16.mxu0 0
      %1668 = vmatpush1.bf16.msra.mxu0 %v1061
      %1669 = vmatprep.subr.bf16.mxu0 0
      %1670 = vmatpush1.bf16.msra.mxu0 %v1062
      %1671 = vmatprep.subr.bf16.mxu0 0
      %1672 = vmatpush1.bf16.msra.mxu0 %v1063
      %1673 = vmatprep.subr.bf16.mxu0 0
      %1674 = vmatpush1.bf16.msra.mxu0 %v1064
      %1675 = vmatprep.subr.bf16.mxu0 0
      %1676 = vmatpush1.bf16.msra.mxu0 %v1065
      %1677 = vmatprep.subr.bf16.mxu0 0
      %1678 = vmatpush1.bf16.msra.mxu0 %v1066
      %1679 = vmatprep.subr.bf16.mxu0 0
      %1680 = vmatpush1.bf16.msra.mxu0 %v1067
      %1681 = vmatprep.subr.bf16.mxu0 0
      %1682 = vmatpush1.bf16.msra.mxu0 %v1068
      %1683 = vmatprep.subr.bf16.mxu0 0
      %1684 = vmatpush1.bf16.msra.mxu0 %v1069
      %1685 = vmatprep.subr.bf16.mxu0 0
      %1686 = vmatpush1.bf16.msra.mxu0 %v1070
      %1687 = vmatprep.mubr.bf16.mxu0 %v418
      %1688 = vmatmul.mubr.bf16.gmra.mrb[0].mxu0 %v417
      %v1689 = vpop.f32.mrb[0].mxu0
      %v1690 = vadd.f32 %v1650, %v1689
      %v1691 = vpop.f32.mrb[0].mxu0
      %v1692 = vpop.f32.mrb[0].mxu0
      %v1693 = vpop.f32.mrb[0].mxu0
      %1694 = vdwg.mxu0
      %1695 = vmatprep.subr.bf16.mxu0 0
      %1696 = vmatpush1.bf16.msra.mxu0 %v1071
      %1697 = vmatprep.subr.bf16.mxu0 0
      %1698 = vmatpush1.bf16.msra.mxu0 %v1072
      %1699 = vmatprep.subr.bf16.mxu0 0
      %1700 = vmatpush1.bf16.msra.mxu0 %v1073
      %1701 = vmatprep.subr.bf16.mxu0 0
      %1702 = vmatpush1.bf16.msra.mxu0 %v1074
      %1703 = vmatprep.subr.bf16.mxu0 0
      %1704 = vmatpush1.bf16.msra.mxu0 %v1075
      %1705 = vmatprep.subr.bf16.mxu0 0
      %1706 = vmatpush1.bf16.msra.mxu0 %v1076
      %1707 = vmatprep.subr.bf16.mxu0 0
      %1708 = vmatpush1.bf16.msra.mxu0 %v1077
      %1709 = vmatprep.subr.bf16.mxu0 0
      %1710 = vmatpush1.bf16.msra.mxu0 %v1078
      %1711 = vmatprep.subr.bf16.mxu0 0
      %1712 = vmatpush1.bf16.msra.mxu0 %v1079
      %1713 = vmatprep.subr.bf16.mxu0 0
      %1714 = vmatpush1.bf16.msra.mxu0 %v1080
      %1715 = vmatprep.subr.bf16.mxu0 0
      %1716 = vmatpush1.bf16.msra.mxu0 %v1081
      %1717 = vmatprep.subr.bf16.mxu0 0
      %1718 = vmatpush1.bf16.msra.mxu0 %v1082
      %1719 = vmatprep.subr.bf16.mxu0 0
      %1720 = vmatpush1.bf16.msra.mxu0 %v1083
      %1721 = vmatprep.subr.bf16.mxu0 0
      %1722 = vmatpush1.bf16.msra.mxu0 %v1084
      %1723 = vmatprep.subr.bf16.mxu0 0
      %1724 = vmatpush1.bf16.msra.mxu0 %v1085
      %1725 = vmatprep.subr.bf16.mxu0 0
      %1726 = vmatpush1.bf16.msra.mxu0 %v1086
      %1727 = vmatprep.mubr.bf16.mxu0 %v420
      %1728 = vmatmul.mubr.bf16.gmra.mrb[0].mxu0 %v419
      %v1729 = vpop.f32.mrb[0].mxu0
      %v1730 = vadd.f32 %v1690, %v1729
      %v1731 = vpop.f32.mrb[0].mxu0
      %v1732 = vpop.f32.mrb[0].mxu0
      %v1733 = vpop.f32.mrb[0].mxu0
      %1734 = vdwg.mxu0
      %1735 = vmatprep.subr.bf16.mxu0 0
      %1736 = vmatpush1.bf16.msra.mxu0 %v1087
      %1737 = vmatprep.subr.bf16.mxu0 0
      %1738 = vmatpush1.bf16.msra.mxu0 %v1088
      %1739 = vmatprep.subr.bf16.mxu0 0
      %1740 = vmatpush1.bf16.msra.mxu0 %v1089
      %1741 = vmatprep.subr.bf16.mxu0 0
      %1742 = vmatpush1.bf16.msra.mxu0 %v1090
      %1743 = vmatprep.subr.bf16.mxu0 0
      %1744 = vmatpush1.bf16.msra.mxu0 %v1091
      %1745 = vmatprep.subr.bf16.mxu0 0
      %1746 = vmatpush1.bf16.msra.mxu0 %v1092
      %1747 = vmatprep.subr.bf16.mxu0 0
      %1748 = vmatpush1.bf16.msra.mxu0 %v1093
      %1749 = vmatprep.subr.bf16.mxu0 0
      %1750 = vmatpush1.bf16.msra.mxu0 %v1094
      %1751 = vmatprep.subr.bf16.mxu0 0
      %1752 = vmatpush1.bf16.msra.mxu0 %v1095
      %1753 = vmatprep.subr.bf16.mxu0 0
      %1754 = vmatpush1.bf16.msra.mxu0 %v1096
      %1755 = vmatprep.subr.bf16.mxu0 0
      %1756 = vmatpush1.bf16.msra.mxu0 %v1097
      %1757 = vmatprep.subr.bf16.mxu0 0
      %1758 = vmatpush1.bf16.msra.mxu0 %v1098
      %1759 = vmatprep.subr.bf16.mxu0 0
      %1760 = vmatpush1.bf16.msra.mxu0 %v1099
      %1761 = vmatprep.subr.bf16.mxu0 0
      %1762 = vmatpush1.bf16.msra.mxu0 %v1100
      %1763 = vmatprep.subr.bf16.mxu0 0
      %1764 = vmatpush1.bf16.msra.mxu0 %v1101
      %1765 = vmatprep.subr.bf16.mxu0 0
      %1766 = vmatpush1.bf16.msra.mxu0 %v1102
      %1767 = vmatprep.mubr.bf16.mxu0 %v422
      %1768 = vmatmul.mubr.bf16.gmra.mrb[0].mxu0 %v421
      %v1769 = vpop.f32.mrb[0].mxu0
      %v1770 = vadd.f32 %v1730, %v1769
      %v1771 = vpop.f32.mrb[0].mxu0
      %v1772 = vpop.f32.mrb[0].mxu0
      %v1773 = vpop.f32.mrb[0].mxu0
      %1774 = vdwg.mxu0
      %1775 = vmatprep.subr.bf16.mxu0 0
      %1776 = vmatpush1.bf16.msra.mxu0 %v1103
      %1777 = vmatprep.subr.bf16.mxu0 0
      %1778 = vmatpush1.bf16.msra.mxu0 %v1104
      %1779 = vmatprep.subr.bf16.mxu0 0
      %1780 = vmatpush1.bf16.msra.mxu0 %v1105
      %1781 = vmatprep.subr.bf16.mxu0 0
      %1782 = vmatpush1.bf16.msra.mxu0 %v1106
      %1783 = vmatprep.subr.bf16.mxu0 0
      %1784 = vmatpush1.bf16.msra.mxu0 %v1107
      %1785 = vmatprep.subr.bf16.mxu0 0
      %1786 = vmatpush1.bf16.msra.mxu0 %v1108
      %1787 = vmatprep.subr.bf16.mxu0 0
      %1788 = vmatpush1.bf16.msra.mxu0 %v1109
      %1789 = vmatprep.subr.bf16.mxu0 0
      %1790 = vmatpush1.bf16.msra.mxu0 %v1110
      %1791 = vmatprep.subr.bf16.mxu0 0
      %1792 = vmatpush1.bf16.msra.mxu0 %v1111
      %1793 = vmatprep.subr.bf16.mxu0 0
      %1794 = vmatpush1.bf16.msra.mxu0 %v1112
      %1795 = vmatprep.subr.bf16.mxu0 0
      %1796 = vmatpush1.bf16.msra.mxu0 %v1113
      %1797 = vmatprep.subr.bf16.mxu0 0
      %1798 = vmatpush1.bf16.msra.mxu0 %v1114
      %1799 = vmatprep.subr.bf16.mxu0 0
      %1800 = vmatpush1.bf16.msra.mxu0 %v1115
      %1801 = vmatprep.subr.bf16.mxu0 0
      %1802 = vmatpush1.bf16.msra.mxu0 %v1116
      %1803 = vmatprep.subr.bf16.mxu0 0
      %1804 = vmatpush1.bf16.msra.mxu0 %v1117
      %1805 = vmatprep.subr.bf16.mxu0 0
      %1806 = vmatpush1.bf16.msra.mxu0 %v1118
      %1807 = vmatprep.mubr.bf16.mxu0 %v424
      %1808 = vmatmul.mubr.bf16.gmra.mrb[0].mxu0 %v423
      %v1809 = vpop.f32.mrb[0].mxu0
      %v1810 = vadd.f32 %v1770, %v1809
      %v1811 = vpop.f32.mrb[0].mxu0
      %v1812 = vpop.f32.mrb[0].mxu0
      %v1813 = vpop.f32.mrb[0].mxu0
      %1814 = vdwg.mxu0
      %1815 = vmatprep.subr.bf16.mxu0 0
      %1816 = vmatpush1.bf16.msra.mxu0 %v1119
      %1817 = vmatprep.subr.bf16.mxu0 0
      %1818 = vmatpush1.bf16.msra.mxu0 %v1120
      %1819 = vmatprep.subr.bf16.mxu0 0
      %1820 = vmatpush1.bf16.msra.mxu0 %v1121
      %1821 = vmatprep.subr.bf16.mxu0 0
      %1822 = vmatpush1.bf16.msra.mxu0 %v1122
      %1823 = vmatprep.subr.bf16.mxu0 0
      %1824 = vmatpush1.bf16.msra.mxu0 %v1123
      %1825 = vmatprep.subr.bf16.mxu0 0
      %1826 = vmatpush1.bf16.msra.mxu0 %v1124
      %1827 = vmatprep.subr.bf16.mxu0 0
      %1828 = vmatpush1.bf16.msra.mxu0 %v1125
      %1829 = vmatprep.subr.bf16.mxu0 0
      %1830 = vmatpush1.bf16.msra.mxu0 %v1126
      %1831 = vmatprep.subr.bf16.mxu0 0
      %1832 = vmatpush1.bf16.msra.mxu0 %v1127
      %1833 = vmatprep.subr.bf16.mxu0 0
      %1834 = vmatpush1.bf16.msra.mxu0 %v1128
      %1835 = vmatprep.subr.bf16.mxu0 0
      %1836 = vmatpush1.bf16.msra.mxu0 %v1129
      %1837 = vmatprep.subr.bf16.mxu0 0
      %1838 = vmatpush1.bf16.msra.mxu0 %v1130
      %1839 = vmatprep.subr.bf16.mxu0 0
      %1840 = vmatpush1.bf16.msra.mxu0 %v1131
      %1841 = vmatprep.subr.bf16.mxu0 0
      %1842 = vmatpush1.bf16.msra.mxu0 %v1132
      %1843 = vmatprep.subr.bf16.mxu0 0
      %1844 = vmatpush1.bf16.msra.mxu0 %v1133
      %1845 = vmatprep.subr.bf16.mxu0 0
      %1846 = vmatpush1.bf16.msra.mxu0 %v1134
      %1847 = vmatprep.mubr.bf16.mxu0 %v426
      %1848 = vmatmul.mubr.bf16.gmra.mrb[0].mxu0 %v425
      %v1849 = vpop.f32.mrb[0].mxu0
      %v1850 = vadd.f32 %v1810, %v1849
      %v1851 = vpop.f32.mrb[0].mxu0
      %v1852 = vpop.f32.mrb[0].mxu0
      %v1853 = vpop.f32.mrb[0].mxu0
      %1854 = vdwg.mxu0
      %1855 = vmatprep.subr.bf16.mxu0 0
      %1856 = vmatpush1.bf16.msra.mxu0 %v1135
      %1857 = vmatprep.subr.bf16.mxu0 0
      %1858 = vmatpush1.bf16.msra.mxu0 %v1136
      %1859 = vmatprep.subr.bf16.mxu0 0
      %1860 = vmatpush1.bf16.msra.mxu0 %v1137
      %1861 = vmatprep.subr.bf16.mxu0 0
      %1862 = vmatpush1.bf16.msra.mxu0 %v1138
      %1863 = vmatprep.subr.bf16.mxu0 0
      %1864 = vmatpush1.bf16.msra.mxu0 %v1139
      %1865 = vmatprep.subr.bf16.mxu0 0
      %1866 = vmatpush1.bf16.msra.mxu0 %v1140
      %1867 = vmatprep.subr.bf16.mxu0 0
      %1868 = vmatpush1.bf16.msra.mxu0 %v1141
      %1869 = vmatprep.subr.bf16.mxu0 0
      %1870 = vmatpush1.bf16.msra.mxu0 %v1142
      %1871 = vmatprep.subr.bf16.mxu0 0
      %1872 = vmatpush1.bf16.msra.mxu0 %v1143
      %1873 = vmatprep.subr.bf16.mxu0 0
      %1874 = vmatpush1.bf16.msra.mxu0 %v1144
      %1875 = vmatprep.subr.bf16.mxu0 0
      %1876 = vmatpush1.bf16.msra.mxu0 %v1145
      %1877 = vmatprep.subr.bf16.mxu0 0
      %1878 = vmatpush1.bf16.msra.mxu0 %v1146
      %1879 = vmatprep.subr.bf16.mxu0 0
      %1880 = vmatpush1.bf16.msra.mxu0 %v1147
      %1881 = vmatprep.subr.bf16.mxu0 0
      %1882 = vmatpush1.bf16.msra.mxu0 %v1148
      %1883 = vmatprep.subr.bf16.mxu0 0
      %1884 = vmatpush1.bf16.msra.mxu0 %v1149
      %1885 = vmatprep.subr.bf16.mxu0 0
      %1886 = vmatpush1.bf16.msra.mxu0 %v1150
      %1887 = vmatprep.mubr.bf16.mxu0 %v428
      %1888 = vmatmul.mubr.bf16.gmra.mrb[0].mxu0 %v427
      %v1889 = vpop.f32.mrb[0].mxu0
      %v1890 = vadd.f32 %v1850, %v1889
      %v1891 = vpop.f32.mrb[0].mxu0
      %v1892 = vpop.f32.mrb[0].mxu0
      %v1893 = vpop.f32.mrb[0].mxu0
      %1894 = vdwg.mxu0
      %1895 = vmatprep.subr.bf16.mxu0 0
      %1896 = vmatpush1.bf16.msra.mxu0 %v1151
      %1897 = vmatprep.subr.bf16.mxu0 0
      %1898 = vmatpush1.bf16.msra.mxu0 %v1152
      %1899 = vmatprep.subr.bf16.mxu0 0
      %1900 = vmatpush1.bf16.msra.mxu0 %v1153
      %1901 = vmatprep.subr.bf16.mxu0 0
      %1902 = vmatpush1.bf16.msra.mxu0 %v1154
      %1903 = vmatprep.subr.bf16.mxu0 0
      %1904 = vmatpush1.bf16.msra.mxu0 %v1155
      %1905 = vmatprep.subr.bf16.mxu0 0
      %1906 = vmatpush1.bf16.msra.mxu0 %v1156
      %1907 = vmatprep.subr.bf16.mxu0 0
      %1908 = vmatpush1.bf16.msra.mxu0 %v1157
      %1909 = vmatprep.subr.bf16.mxu0 0
      %1910 = vmatpush1.bf16.msra.mxu0 %v1158
      %1911 = vmatprep.subr.bf16.mxu0 0
      %1912 = vmatpush1.bf16.msra.mxu0 %v1159
      %1913 = vmatprep.subr.bf16.mxu0 0
      %1914 = vmatpush1.bf16.msra.mxu0 %v1160
      %1915 = vmatprep.subr.bf16.mxu0 0
      %1916 = vmatpush1.bf16.msra.mxu0 %v1161
      %1917 = vmatprep.subr.bf16.mxu0 0
      %1918 = vmatpush1.bf16.msra.mxu0 %v1162
      %1919 = vmatprep.subr.bf16.mxu0 0
      %1920 = vmatpush1.bf16.msra.mxu0 %v1163
      %1921 = vmatprep.subr.bf16.mxu0 0
      %1922 = vmatpush1.bf16.msra.mxu0 %v1164
      %1923 = vmatprep.subr.bf16.mxu0 0
      %1924 = vmatpush1.bf16.msra.mxu0 %v1165
      %1925 = vmatprep.subr.bf16.mxu0 0
      %1926 = vmatpush1.bf16.msra.mxu0 %v1166
      %1927 = vmatprep.mubr.bf16.mxu0 %v430
      %1928 = vmatmul.mubr.bf16.gmra.mrb[0].mxu0 %v429
      %v1929 = vpop.f32.mrb[0].mxu0
      %v1930 = vadd.f32 %v1890, %v1929
      %v1931 = vpop.f32.mrb[0].mxu0
      %v1932 = vpop.f32.mrb[0].mxu0
      %v1933 = vpop.f32.mrb[0].mxu0
      %1934 = vdwg.mxu0
      %1935 = vmatprep.subr.bf16.mxu0 0
      %1936 = vmatpush1.bf16.msra.mxu0 %v1039
      %1937 = vmatprep.subr.bf16.mxu0 0
      %1938 = vmatpush1.bf16.msra.mxu0 %v1040
      %1939 = vmatprep.subr.bf16.mxu0 0
      %1940 = vmatpush1.bf16.msra.mxu0 %v1041
      %1941 = vmatprep.subr.bf16.mxu0 0
      %1942 = vmatpush1.bf16.msra.mxu0 %v1042
      %1943 = vmatprep.subr.bf16.mxu0 0
      %1944 = vmatpush1.bf16.msra.mxu0 %v1043
      %1945 = vmatprep.subr.bf16.mxu0 0
      %1946 = vmatpush1.bf16.msra.mxu0 %v1044
      %1947 = vmatprep.subr.bf16.mxu0 0
      %1948 = vmatpush1.bf16.msra.mxu0 %v1045
      %1949 = vmatprep.subr.bf16.mxu0 0
      %1950 = vmatpush1.bf16.msra.mxu0 %v1046
      %1951 = vmatprep.subr.bf16.mxu0 0
      %1952 = vmatpush1.bf16.msra.mxu0 %v1047
      %1953 = vmatprep.subr.bf16.mxu0 0
      %1954 = vmatpush1.bf16.msra.mxu0 %v1048
      %1955 = vmatprep.subr.bf16.mxu0 0
      %1956 = vmatpush1.bf16.msra.mxu0 %v1049
      %1957 = vmatprep.subr.bf16.mxu0 0
      %1958 = vmatpush1.bf16.msra.mxu0 %v1050
      %1959 = vmatprep.subr.bf16.mxu0 0
      %1960 = vmatpush1.bf16.msra.mxu0 %v1051
      %1961 = vmatprep.subr.bf16.mxu0 0
      %1962 = vmatpush1.bf16.msra.mxu0 %v1052
      %1963 = vmatprep.subr.bf16.mxu0 0
      %1964 = vmatpush1.bf16.msra.mxu0 %v1053
      %1965 = vmatprep.subr.bf16.mxu0 0
      %1966 = vmatpush1.bf16.msra.mxu0 %v1054
      %1967 = vmatprep.mubr.bf16.mxu0 %v512
      %1968 = vmatmul.mubr.bf16.gmra.mrb[0].mxu0 %v511
      %v1969 = vpop.f32.mrb[0].mxu0
      %v1970 = vadd.f32 0.0, %v1969
      %v1971 = vpop.f32.mrb[0].mxu0
      %v1972 = vpop.f32.mrb[0].mxu0
      %v1973 = vpop.f32.mrb[0].mxu0
      %1974 = vdwg.mxu0
      %1975 = vmatprep.subr.bf16.mxu0 0
      %1976 = vmatpush1.bf16.msra.mxu0 %v1055
      %1977 = vmatprep.subr.bf16.mxu0 0
      %1978 = vmatpush1.bf16.msra.mxu0 %v1056
      %1979 = vmatprep.subr.bf16.mxu0 0
      %1980 = vmatpush1.bf16.msra.mxu0 %v1057
      %1981 = vmatprep.subr.bf16.mxu0 0
      %1982 = vmatpush1.bf16.msra.mxu0 %v1058
      %1983 = vmatprep.subr.bf16.mxu0 0
      %1984 = vmatpush1.bf16.msra.mxu0 %v1059
      %1985 = vmatprep.subr.bf16.mxu0 0
      %1986 = vmatpush1.bf16.msra.mxu0 %v1060
      %1987 = vmatprep.subr.bf16.mxu0 0
      %1988 = vmatpush1.bf16.msra.mxu0 %v1061
      %1989 = vmatprep.subr.bf16.mxu0 0
      %1990 = vmatpush1.bf16.msra.mxu0 %v1062
      %1991 = vmatprep.subr.bf16.mxu0 0
      %1992 = vmatpush1.bf16.msra.mxu0 %v1063
      %1993 = vmatprep.subr.bf16.mxu0 0
      %1994 = vmatpush1.bf16.msra.mxu0 %v1064
      %1995 = vmatprep.subr.bf16.mxu0 0
      %1996 = vmatpush1.bf16.msra.mxu0 %v1065
      %1997 = vmatprep.subr.bf16.mxu0 0
      %1998 = vmatpush1.bf16.msra.mxu0 %v1066
      %1999 = vmatprep.subr.bf16.mxu0 0
      %2000 = vmatpush1.bf16.msra.mxu0 %v1067
      %2001 = vmatprep.subr.bf16.mxu0 0
      %2002 = vmatpush1.bf16.msra.mxu0 %v1068
      %2003 = vmatprep.subr.bf16.mxu0 0
      %2004 = vmatpush1.bf16.msra.mxu0 %v1069
      %2005 = vmatprep.subr.bf16.mxu0 0
      %2006 = vmatpush1.bf16.msra.mxu0 %v1070
      %2007 = vmatprep.mubr.bf16.mxu0 %v514
      %2008 = vmatmul.mubr.bf16.gmra.mrb[0].mxu0 %v513
      %v2009 = vpop.f32.mrb[0].mxu0
      %v2010 = vadd.f32 %v1970, %v2009
      %v2011 = vpop.f32.mrb[0].mxu0
      %v2012 = vpop.f32.mrb[0].mxu0
      %v2013 = vpop.f32.mrb[0].mxu0
      %2014 = vdwg.mxu0
      %2015 = vmatprep.subr.bf16.mxu0 0
      %2016 = vmatpush1.bf16.msra.mxu0 %v1071
      %2017 = vmatprep.subr.bf16.mxu0 0
      %2018 = vmatpush1.bf16.msra.mxu0 %v1072
      %2019 = vmatprep.subr.bf16.mxu0 0
      %2020 = vmatpush1.bf16.msra.mxu0 %v1073
      %2021 = vmatprep.subr.bf16.mxu0 0
      %2022 = vmatpush1.bf16.msra.mxu0 %v1074
      %2023 = vmatprep.subr.bf16.mxu0 0
      %2024 = vmatpush1.bf16.msra.mxu0 %v1075
      %2025 = vmatprep.subr.bf16.mxu0 0
      %2026 = vmatpush1.bf16.msra.mxu0 %v1076
      %2027 = vmatprep.subr.bf16.mxu0 0
      %2028 = vmatpush1.bf16.msra.mxu0 %v1077
      %2029 = vmatprep.subr.bf16.mxu0 0
      %2030 = vmatpush1.bf16.msra.mxu0 %v1078
      %2031 = vmatprep.subr.bf16.mxu0 0
      %2032 = vmatpush1.bf16.msra.mxu0 %v1079
      %2033 = vmatprep.subr.bf16.mxu0 0
      %2034 = vmatpush1.bf16.msra.mxu0 %v1080
      %2035 = vmatprep.subr.bf16.mxu0 0
      %2036 = vmatpush1.bf16.msra.mxu0 %v1081
      %2037 = vmatprep.subr.bf16.mxu0 0
      %2038 = vmatpush1.bf16.msra.mxu0 %v1082
      %2039 = vmatprep.subr.bf16.mxu0 0
      %2040 = vmatpush1.bf16.msra.mxu0 %v1083
      %2041 = vmatprep.subr.bf16.mxu0 0
      %2042 = vmatpush1.bf16.msra.mxu0 %v1084
      %2043 = vmatprep.subr.bf16.mxu0 0
      %2044 = vmatpush1.bf16.msra.mxu0 %v1085
      %2045 = vmatprep.subr.bf16.mxu0 0
      %2046 = vmatpush1.bf16.msra.mxu0 %v1086
      %2047 = vmatprep.mubr.bf16.mxu0 %v516
      %2048 = vmatmul.mubr.bf16.gmra.mrb[0].mxu0 %v515
      %v2049 = vpop.f32.mrb[0].mxu0
      %v2050 = vadd.f32 %v2010, %v2049
      %v2051 = vpop.f32.mrb[0].mxu0
      %v2052 = vpop.f32.mrb[0].mxu0
      %v2053 = vpop.f32.mrb[0].mxu0
      %2054 = vdwg.mxu0
      %2055 = vmatprep.subr.bf16.mxu0 0
      %2056 = vmatpush1.bf16.msra.mxu0 %v1087
      %2057 = vmatprep.subr.bf16.mxu0 0
      %2058 = vmatpush1.bf16.msra.mxu0 %v1088
      %2059 = vmatprep.subr.bf16.mxu0 0
      %2060 = vmatpush1.bf16.msra.mxu0 %v1089
      %2061 = vmatprep.subr.bf16.mxu0 0
      %2062 = vmatpush1.bf16.msra.mxu0 %v1090
      %2063 = vmatprep.subr.bf16.mxu0 0
      %2064 = vmatpush1.bf16.msra.mxu0 %v1091
      %2065 = vmatprep.subr.bf16.mxu0 0
      %2066 = vmatpush1.bf16.msra.mxu0 %v1092
      %2067 = vmatprep.subr.bf16.mxu0 0
      %2068 = vmatpush1.bf16.msra.mxu0 %v1093
      %2069 = vmatprep.subr.bf16.mxu0 0
      %2070 = vmatpush1.bf16.msra.mxu0 %v1094
      %2071 = vmatprep.subr.bf16.mxu0 0
      %2072 = vmatpush1.bf16.msra.mxu0 %v1095
      %2073 = vmatprep.subr.bf16.mxu0 0
      %2074 = vmatpush1.bf16.msra.mxu0 %v1096
      %2075 = vmatprep.subr.bf16.mxu0 0
      %2076 = vmatpush1.bf16.msra.mxu0 %v1097
      %2077 = vmatprep.subr.bf16.mxu0 0
      %2078 = vmatpush1.bf16.msra.mxu0 %v1098
      %2079 = vmatprep.subr.bf16.mxu0 0
      %2080 = vmatpush1.bf16.msra.mxu0 %v1099
      %2081 = vmatprep.subr.bf16.mxu0 0
      %2082 = vmatpush1.bf16.msra.mxu0 %v1100
      %2083 = vmatprep.subr.bf16.mxu0 0
      %2084 = vmatpush1.bf16.msra.mxu0 %v1101
      %2085 = vmatprep.subr.bf16.mxu0 0
      %2086 = vmatpush1.bf16.msra.mxu0 %v1102
      %2087 = vmatprep.mubr.bf16.mxu0 %v518
      %2088 = vmatmul.mubr.bf16.gmra.mrb[0].mxu0 %v517
      %v2089 = vpop.f32.mrb[0].mxu0
      %v2090 = vadd.f32 %v2050, %v2089
      %v2091 = vpop.f32.mrb[0].mxu0
      %v2092 = vpop.f32.mrb[0].mxu0
      %v2093 = vpop.f32.mrb[0].mxu0
      %2094 = vdwg.mxu0
      %2095 = vmatprep.subr.bf16.mxu0 0
      %2096 = vmatpush1.bf16.msra.mxu0 %v1103
      %2097 = vmatprep.subr.bf16.mxu0 0
      %2098 = vmatpush1.bf16.msra.mxu0 %v1104
      %2099 = vmatprep.subr.bf16.mxu0 0
      %2100 = vmatpush1.bf16.msra.mxu0 %v1105
      %2101 = vmatprep.subr.bf16.mxu0 0
      %2102 = vmatpush1.bf16.msra.mxu0 %v1106
      %2103 = vmatprep.subr.bf16.mxu0 0
      %2104 = vmatpush1.bf16.msra.mxu0 %v1107
      %2105 = vmatprep.subr.bf16.mxu0 0
      %2106 = vmatpush1.bf16.msra.mxu0 %v1108
      %2107 = vmatprep.subr.bf16.mxu0 0
      %2108 = vmatpush1.bf16.msra.mxu0 %v1109
      %2109 = vmatprep.subr.bf16.mxu0 0
      %2110 = vmatpush1.bf16.msra.mxu0 %v1110
      %2111 = vmatprep.subr.bf16.mxu0 0
      %2112 = vmatpush1.bf16.msra.mxu0 %v1111
      %2113 = vmatprep.subr.bf16.mxu0 0
      %2114 = vmatpush1.bf16.msra.mxu0 %v1112
      %2115 = vmatprep.subr.bf16.mxu0 0
      %2116 = vmatpush1.bf16.msra.mxu0 %v1113
      %2117 = vmatprep.subr.bf16.mxu0 0
      %2118 = vmatpush1.bf16.msra.mxu0 %v1114
      %2119 = vmatprep.subr.bf16.mxu0 0
      %2120 = vmatpush1.bf16.msra.mxu0 %v1115
      %2121 = vmatprep.subr.bf16.mxu0 0
      %2122 = vmatpush1.bf16.msra.mxu0 %v1116
      %2123 = vmatprep.subr.bf16.mxu0 0
      %2124 = vmatpush1.bf16.msra.mxu0 %v1117
      %2125 = vmatprep.subr.bf16.mxu0 0
      %2126 = vmatpush1.bf16.msra.mxu0 %v1118
      %2127 = vmatprep.mubr.bf16.mxu0 %v520
      %2128 = vmatmul.mubr.bf16.gmra.mrb[0].mxu0 %v519
      %v2129 = vpop.f32.mrb[0].mxu0
      %v2130 = vadd.f32 %v2090, %v2129
      %v2131 = vpop.f32.mrb[0].mxu0
      %v2132 = vpop.f32.mrb[0].mxu0
      %v2133 = vpop.f32.mrb[0].mxu0
      %2134 = vdwg.mxu0
      %2135 = vmatprep.subr.bf16.mxu0 0
      %2136 = vmatpush1.bf16.msra.mxu0 %v1119
      %2137 = vmatprep.subr.bf16.mxu0 0
      %2138 = vmatpush1.bf16.msra.mxu0 %v1120
      %2139 = vmatprep.subr.bf16.mxu0 0
      %2140 = vmatpush1.bf16.msra.mxu0 %v1121
      %2141 = vmatprep.subr.bf16.mxu0 0
      %2142 = vmatpush1.bf16.msra.mxu0 %v1122
      %2143 = vmatprep.subr.bf16.mxu0 0
      %2144 = vmatpush1.bf16.msra.mxu0 %v1123
      %2145 = vmatprep.subr.bf16.mxu0 0
      %2146 = vmatpush1.bf16.msra.mxu0 %v1124
      %2147 = vmatprep.subr.bf16.mxu0 0
      %2148 = vmatpush1.bf16.msra.mxu0 %v1125
      %2149 = vmatprep.subr.bf16.mxu0 0
      %2150 = vmatpush1.bf16.msra.mxu0 %v1126
      %2151 = vmatprep.subr.bf16.mxu0 0
      %2152 = vmatpush1.bf16.msra.mxu0 %v1127
      %2153 = vmatprep.subr.bf16.mxu0 0
      %2154 = vmatpush1.bf16.msra.mxu0 %v1128
      %2155 = vmatprep.subr.bf16.mxu0 0
      %2156 = vmatpush1.bf16.msra.mxu0 %v1129
      %2157 = vmatprep.subr.bf16.mxu0 0
      %2158 = vmatpush1.bf16.msra.mxu0 %v1130
      %2159 = vmatprep.subr.bf16.mxu0 0
      %2160 = vmatpush1.bf16.msra.mxu0 %v1131
      %2161 = vmatprep.subr.bf16.mxu0 0
      %2162 = vmatpush1.bf16.msra.mxu0 %v1132
      %2163 = vmatprep.subr.bf16.mxu0 0
      %2164 = vmatpush1.bf16.msra.mxu0 %v1133
      %2165 = vmatprep.subr.bf16.mxu0 0
      %2166 = vmatpush1.bf16.msra.mxu0 %v1134
      %2167 = vmatprep.mubr.bf16.mxu0 %v522
      %2168 = vmatmul.mubr.bf16.gmra.mrb[0].mxu0 %v521
      %v2169 = vpop.f32.mrb[0].mxu0
      %v2170 = vadd.f32 %v2130, %v2169
      %v2171 = vpop.f32.mrb[0].mxu0
      %v2172 = vpop.f32.mrb[0].mxu0
      %v2173 = vpop.f32.mrb[0].mxu0
      %2174 = vdwg.mxu0
      %2175 = vmatprep.subr.bf16.mxu0 0
      %2176 = vmatpush1.bf16.msra.mxu0 %v1135
      %2177 = vmatprep.subr.bf16.mxu0 0
      %2178 = vmatpush1.bf16.msra.mxu0 %v1136
      %2179 = vmatprep.subr.bf16.mxu0 0
      %2180 = vmatpush1.bf16.msra.mxu0 %v1137
      %2181 = vmatprep.subr.bf16.mxu0 0
      %2182 = vmatpush1.bf16.msra.mxu0 %v1138
      %2183 = vmatprep.subr.bf16.mxu0 0
      %2184 = vmatpush1.bf16.msra.mxu0 %v1139
      %2185 = vmatprep.subr.bf16.mxu0 0
      %2186 = vmatpush1.bf16.msra.mxu0 %v1140
      %2187 = vmatprep.subr.bf16.mxu0 0
      %2188 = vmatpush1.bf16.msra.mxu0 %v1141
      %2189 = vmatprep.subr.bf16.mxu0 0
      %2190 = vmatpush1.bf16.msra.mxu0 %v1142
      %2191 = vmatprep.subr.bf16.mxu0 0
      %2192 = vmatpush1.bf16.msra.mxu0 %v1143
      %2193 = vmatprep.subr.bf16.mxu0 0
      %2194 = vmatpush1.bf16.msra.mxu0 %v1144
      %2195 = vmatprep.subr.bf16.mxu0 0
      %2196 = vmatpush1.bf16.msra.mxu0 %v1145
      %2197 = vmatprep.subr.bf16.mxu0 0
      %2198 = vmatpush1.bf16.msra.mxu0 %v1146
      %2199 = vmatprep.subr.bf16.mxu0 0
      %2200 = vmatpush1.bf16.msra.mxu0 %v1147
      %2201 = vmatprep.subr.bf16.mxu0 0
      %2202 = vmatpush1.bf16.msra.mxu0 %v1148
      %2203 = vmatprep.subr.bf16.mxu0 0
      %2204 = vmatpush1.bf16.msra.mxu0 %v1149
      %2205 = vmatprep.subr.bf16.mxu0 0
      %2206 = vmatpush1.bf16.msra.mxu0 %v1150
      %2207 = vmatprep.mubr.bf16.mxu0 %v524
      %2208 = vmatmul.mubr.bf16.gmra.mrb[0].mxu0 %v523
      %v2209 = vpop.f32.mrb[0].mxu0
      %v2210 = vadd.f32 %v2170, %v2209
      %v2211 = vpop.f32.mrb[0].mxu0
      %v2212 = vpop.f32.mrb[0].mxu0
      %v2213 = vpop.f32.mrb[0].mxu0
      %2214 = vdwg.mxu0
      %2215 = vmatprep.subr.bf16.mxu0 0
      %2216 = vmatpush1.bf16.msra.mxu0 %v1151
      %2217 = vmatprep.subr.bf16.mxu0 0
      %2218 = vmatpush1.bf16.msra.mxu0 %v1152
      %2219 = vmatprep.subr.bf16.mxu0 0
      %2220 = vmatpush1.bf16.msra.mxu0 %v1153
      %2221 = vmatprep.subr.bf16.mxu0 0
      %2222 = vmatpush1.bf16.msra.mxu0 %v1154
      %2223 = vmatprep.subr.bf16.mxu0 0
      %2224 = vmatpush1.bf16.msra.mxu0 %v1155
      %2225 = vmatprep.subr.bf16.mxu0 0
      %2226 = vmatpush1.bf16.msra.mxu0 %v1156
      %2227 = vmatprep.subr.bf16.mxu0 0
      %2228 = vmatpush1.bf16.msra.mxu0 %v1157
      %2229 = vmatprep.subr.bf16.mxu0 0
      %2230 = vmatpush1.bf16.msra.mxu0 %v1158
      %2231 = vmatprep.subr.bf16.mxu0 0
      %2232 = vmatpush1.bf16.msra.mxu0 %v1159
      %2233 = vmatprep.subr.bf16.mxu0 0
      %2234 = vmatpush1.bf16.msra.mxu0 %v1160
      %2235 = vmatprep.subr.bf16.mxu0 0
      %2236 = vmatpush1.bf16.msra.mxu0 %v1161
      %2237 = vmatprep.subr.bf16.mxu0 0
      %2238 = vmatpush1.bf16.msra.mxu0 %v1162
      %2239 = vmatprep.subr.bf16.mxu0 0
      %2240 = vmatpush1.bf16.msra.mxu0 %v1163
      %2241 = vmatprep.subr.bf16.mxu0 0
      %2242 = vmatpush1.bf16.msra.mxu0 %v1164
      %2243 = vmatprep.subr.bf16.mxu0 0
      %2244 = vmatpush1.bf16.msra.mxu0 %v1165
      %2245 = vmatprep.subr.bf16.mxu0 0
      %2246 = vmatpush1.bf16.msra.mxu0 %v1166
      %2247 = vmatprep.mubr.bf16.mxu0 %v526
      %2248 = vmatmul.mubr.bf16.gmra.mrb[0].mxu0 %v525
      %v2249 = vpop.f32.mrb[0].mxu0
      %v2250 = vadd.f32 %v2210, %v2249
      %v2251 = vpop.f32.mrb[0].mxu0
      %v2252 = vpop.f32.mrb[0].mxu0
      %v2253 = vpop.f32.mrb[0].mxu0
      %2254 = vdwg.mxu0
      %v2255 = vadd.f32 %v1930, %v2250
      %v2256 = vmul.f32 %v2255, 0.03125
      %vm2257 = vcmask 523264
      %2258 = vst.msk [vmem:[%s141] sm:$0xff] %vm2257, %v2256
      %p2259 = scmp.lt.s32.totalorder %s13, 1
      %s2260 = scalar_select %p2259, %s13, 1
      %s2261 = smul.addr %s2260, 8
      %s2262 = scalar_lea.vmem %s2, %s2261
      // Predicated region
      $region29: #{mixed_pooling_avg_pool.1} parent=27 // pred_check
        %p2263 = pneg %p78
      $region30: #{mixed_pooling_avg_pool.1} parent=27 // pred_check_branch
        %2265 = sbr.rel (%p2263) target = $region32
      $region31: #{mixed_pooling_avg_pool.1} parent=27 // pred_region
        _
      $region32: #{mixed_pooling_avg_pool.1} parent=27 // pred_fallthru
        _
    $region28: #{mixed_pooling_avg_pool.1} parent=5 // pred_fallthru
      _
    %p2266 = scmp.le.s32.totalorder 2, %s8
    // Predicated region
    $region33: #{mixed_pooling_avg_pool.1} parent=5 // pred_check
      %p2267 = pneg %p2266
    $region34: #{mixed_pooling_avg_pool.1} parent=5 // pred_check_branch
      %2269 = sbr.rel (%p2267) target = $region36
    $region35: #{mixed_pooling_avg_pool.1} parent=5 // pred_region
      %s2270 = ssub.s32 %s8, 2
      // Predicated region
      $region37: #{mixed_pooling_avg_pool.1} parent=35 // pred_check
        %p2271 = pneg %p84
      $region38: #{mixed_pooling_avg_pool.1} parent=35 // pred_check_branch
        %2273 = sbr.rel (%p2271) target = $region40
      $region39: #{mixed_pooling_avg_pool.1} parent=35 // pred_region
        %p2274 = scmp.lt.s32.totalorder %s14, 1
        %s2275 = scalar_select %p2274, %s14, 1
        %s2276 = smul.addr %s2275, 8
        %s2277 = scalar_lea.vmem %s2, %s2276
      $region40: #{mixed_pooling_avg_pool.1} parent=35 // pred_fallthru
        _
    $region36: #{mixed_pooling_avg_pool.1} parent=5 // pred_fallthru
      _
  $region6: #{mixed_pooling_avg_pool.1} parent=0 // loop_footer
    %s12 = sadd.s32 1, %s8
  $region7: #{mixed_pooling_avg_pool.1} parent=0 // loop_footer_branch
    %7 = sbr.rel target = $region3
  $region8: #{mixed_pooling_avg_pool.1} parent=0 // loop_exit
    _

</llo_original>
